<compile_context>
chip_gen: v7x
topology: tpu7x:2x2x1
jax: 0.10.0
libtpu: 0.0.40
codegen_flags: <defaults>
</compile_context>

<pallas_src>
import functools
import math

import jax
import jax.numpy as jnp
from jax.experimental import pallas as pl
from jax.experimental.pallas import tpu as pltpu

SCALE = math.sqrt(0.5)          # torch.sqrt(torch.FloatTensor([0.5]))
_PAD_ROWS = 8                   # sublane-aligned region for the causal pad rows


# --------------------------------------------------------------------------
# Fused decoder kernel: grid = (batch, layer)
# --------------------------------------------------------------------------
def _decoder_fused_kernel(
    emb_ref,                    # (1, Tp, Ep)     f32   token+pos embedding
    ekT_ref,                    # (1, Ep, Sp)     bf16  encoder_conved^T
    ecb_ref,                    # (1, Sp, Ep)     bf16  encoder_combined
    convw_ref,                  # (1, k*Hp, 2*Hp) bf16  this layer's conv weight
    convb_ref,                  # (1, 1, 2*Hp)    f32   this layer's conv bias
    emb2hid_w_ref, emb2hid_b_ref,    # (Ep,Hp) bf16 / (1,Hp) f32
    attn_h2e_w_ref, attn_h2e_b_ref,  # (Hp,Ep) bf16 / (1,Ep) f32
    attn_e2h_w_ref, attn_e2h_b_ref,  # (Ep,Hp) bf16 / (1,Hp) f32
    hid2emb_w_ref, hid2emb_b_ref,    # (Hp,Ep) bf16 / (1,Ep) f32
    fc_w_ref, fc_b_ref,              # (Ep,Vp) bf16 / (1,Vp) f32
    out_ref,                    # (1, Tp, Vp)     f32
    attn_ref,                   # (1, Tp, Sp)     f32
    xpad_ref,                   # VMEM scratch (_PAD_ROWS + Tp, Hp) f32
    *, kernel_size, pad_value, src_len):
  l = pl.program_id(1)
  total, Hp = xpad_ref.shape
  Tp = total - _PAD_ROWS

  emb = emb_ref[0]                                     # (Tp, Ep) f32

  @pl.when(l == 0)
  def _init():
    # causal "time" padding rows, filled with trg_pad_idx (as in the reference)
    xpad_ref[pl.ds(0, _PAD_ROWS), :] = jnp.full(
        (_PAD_ROWS, Hp), pad_value, dtype=jnp.float32)
    # conv_inp = emb2hid(embedded)   (folded boundary linear)
    h0 = jnp.dot(emb.astype(jnp.bfloat16), emb2hid_w_ref[...],
                 preferred_element_type=jnp.float32) + emb2hid_b_ref[...]
    xpad_ref[pl.ds(_PAD_ROWS, Tp), :] = h0

  xpad = xpad_ref[...]                                 # (_PAD_ROWS + Tp, Hp)
  x = xpad[_PAD_ROWS:, :]                              # current conv input (f32)

  # ---- causal Conv1d as a single deep-K im2col matmul, then GLU ------------
  base = _PAD_ROWS - (kernel_size - 1)
  cat = jnp.concatenate(
      [xpad[base + j: base + j + Tp, :] for j in range(kernel_size)], axis=1)
  y = jnp.dot(cat.astype(jnp.bfloat16), convw_ref[0],
              preferred_element_type=jnp.float32) + convb_ref[0]
  conved = y[:, :Hp] * jax.nn.sigmoid(y[:, Hp:])       # GLU (f32 elementwise)

  # ---- attention ------------------------------------------------------------
  conved_emb = jnp.dot(conved.astype(jnp.bfloat16), attn_h2e_w_ref[...],
                       preferred_element_type=jnp.float32) + attn_h2e_b_ref[...]
  combined = (conved_emb + emb) * SCALE                # (Tp, Ep) f32
  energy = jnp.dot(combined.astype(jnp.bfloat16), ekT_ref[0],
                   preferred_element_type=jnp.float32)  # (Tp, Sp)
  col = jax.lax.broadcasted_iota(jnp.int32, energy.shape, 1)
  energy = jnp.where(col < src_len, energy, -1e30)     # mask padded source cols
  m = jnp.max(energy, axis=-1, keepdims=True)
  p = jnp.exp(energy - m)
  attn = p * pl.reciprocal(jnp.sum(p, axis=-1, keepdims=True), approx=True)
  attended = jnp.dot(attn.astype(jnp.bfloat16), ecb_ref[0],
                     preferred_element_type=jnp.float32)            # (Tp, Ep)
  attended = jnp.dot(attended.astype(jnp.bfloat16), attn_e2h_w_ref[...],
                     preferred_element_type=jnp.float32) + attn_e2h_b_ref[...]
  conved = (conved + attended) * SCALE                 # attended_combined
  new_x = (conved + x) * SCALE                         # residual with layer input

  xpad_ref[pl.ds(_PAD_ROWS, Tp), :] = new_x            # carry to next layer

  @pl.when(l == pl.num_programs(1) - 1)
  def _finalize():
    # hid2emb + fc_out folded in; `conved` never leaves VMEM.
    conved_e = jnp.dot(new_x.astype(jnp.bfloat16), hid2emb_w_ref[...],
                       preferred_element_type=jnp.float32) + hid2emb_b_ref[...]
    logits = jnp.dot(conved_e.astype(jnp.bfloat16), fc_w_ref[...],
                     preferred_element_type=jnp.float32) + fc_b_ref[...]
    out_ref[0] = logits.astype(out_ref.dtype)
    attn_ref[0] = attn.astype(attn_ref.dtype)


# --------------------------------------------------------------------------
# Wrapper: padding / layout plumbing + single pallas_call
# --------------------------------------------------------------------------
def _round_up(x, m):
  return (x + m - 1) // m * m


def _pad2d(a, rows, cols, dtype):
  return jnp.zeros((rows, cols), dtype).at[:a.shape[0], :a.shape[1]].set(
      a.astype(dtype))


def _pad_bias(b, cols):
  return jnp.zeros((1, cols), jnp.float32).at[0, :b.shape[0]].set(b)


def decoder_forward(params, trg, encoder_conved, encoder_combined,
                    kernel_size, trg_pad_idx, n_layers):
  B, T = trg.shape
  E = params["tok_emb"].shape[1]
  H = params["emb2hid_w"].shape[1]
  V = params["fc_out_w"].shape[1]
  S = encoder_conved.shape[1]

  Ep = _round_up(E, 128)
  Hp = _round_up(H, 128)
  Sp = _round_up(S, 128)
  Vp = _round_up(V, 128)
  Tp = _round_up(T, 8)
  bf16 = jnp.bfloat16

  # ---- embedding lookup (XLA glue) + zero padding --------------------------
  tok = jnp.take(params["tok_emb"], trg, axis=0)                 # (B, T, E)
  pos = params["pos_emb"][:T][None, :, :]
  embedded = (tok + pos).astype(jnp.float32)                     # dropout = id
  embedded_p = jnp.zeros((B, Tp, Ep), jnp.float32).at[:, :T, :E].set(embedded)

  # encoder states: pre-transpose conved (for the energy matmul), pad, bf16
  ekT = jnp.zeros((B, Ep, Sp), jnp.float32).at[:, :E, :S].set(
      jnp.transpose(encoder_conved, (0, 2, 1))).astype(bf16)
  ecb = jnp.zeros((B, Sp, Ep), jnp.float32).at[:, :S, :E].set(
      encoder_combined).astype(bf16)

  # ---- conv weights -> flattened im2col layout (k*Hp, 2*Hp) -----------------
  cw = params["conv_w"]       # (L, k, H, 2H): cw[l, j, c, o] == torch W_l[o, c, j]
  cb = params["conv_b"]       # (L, 2H)
  L, k = cw.shape[0], cw.shape[1]
  wflat = jnp.zeros((L, k, Hp, 2 * Hp), jnp.float32)
  wflat = wflat.at[:, :, :H, :H].set(cw[..., :H])                # GLU "a" half
  wflat = wflat.at[:, :, :H, Hp:Hp + H].set(cw[..., H:])         # GLU "b" half
  wflat = wflat.reshape(L, k * Hp, 2 * Hp).astype(bf16)
  bflat = jnp.zeros((L, 1, 2 * Hp), jnp.float32)
  bflat = bflat.at[:, 0, :H].set(cb[:, :H]).at[:, 0, Hp:Hp + H].set(cb[:, H:])

  # ---- linear weights: lane-dense padded, bf16 operands, f32 biases ---------
  emb2hid_w = _pad2d(params["emb2hid_w"], Ep, Hp, bf16)
  emb2hid_b = _pad_bias(params["emb2hid_b"], Hp)
  attn_h2e_w = _pad2d(params["attn_h2e_w"], Hp, Ep, bf16)
  attn_h2e_b = _pad_bias(params["attn_h2e_b"], Ep)
  attn_e2h_w = _pad2d(params["attn_e2h_w"], Ep, Hp, bf16)
  attn_e2h_b = _pad_bias(params["attn_e2h_b"], Hp)
  hid2emb_w = _pad2d(params["hid2emb_w"], Hp, Ep, bf16)
  hid2emb_b = _pad_bias(params["hid2emb_b"], Ep)
  # NOTE: for realistic vocab sizes fc_out should be its own pallas_call tiled
  # over Vp (lane-dense 128/256 output tiles); at Vp=128 a single block is fine.
  fc_w = _pad2d(params["fc_out_w"], Ep, Vp, bf16)
  fc_b = _pad_bias(params["fc_out_b"], Vp)

  kern = functools.partial(_decoder_fused_kernel, kernel_size=kernel_size,
                           pad_value=float(trg_pad_idx), src_len=S)

  batch_spec = lambda shape: pl.BlockSpec(shape, lambda b, l: (b, 0, 0))
  layer_spec = lambda shape: pl.BlockSpec(shape, lambda b, l: (l, 0, 0))
  w_spec = lambda shape: pl.BlockSpec(shape, lambda b, l: (0, 0))

  out_p, attn_p = pl.pallas_call(
      kern,
      out_shape=(jax.ShapeDtypeStruct((B, Tp, Vp), jnp.float32),
                 jax.ShapeDtypeStruct((B, Tp, Sp), jnp.float32)),
      grid=(B, n_layers),
      in_specs=[
          batch_spec((1, Tp, Ep)),            # embedded
          batch_spec((1, Ep, Sp)),            # encoder_conved^T
          batch_spec((1, Sp, Ep)),            # encoder_combined
          layer_spec((1, k * Hp, 2 * Hp)),    # conv weight (streamed per layer)
          layer_spec((1, 1, 2 * Hp)),         # conv bias
          w_spec((Ep, Hp)), w_spec((1, Hp)),  # emb2hid
          w_spec((Hp, Ep)), w_spec((1, Ep)),  # attn_hid2emb
          w_spec((Ep, Hp)), w_spec((1, Hp)),  # attn_emb2hid
          w_spec((Hp, Ep)), w_spec((1, Ep)),  # hid2emb
          w_spec((Ep, Vp)), w_spec((1, Vp)),  # fc_out
      ],
      out_specs=(batch_spec((1, Tp, Vp)),
                 batch_spec((1, Tp, Sp))),
      scratch_shapes=[pltpu.VMEM((_PAD_ROWS + Tp, Hp), jnp.float32)],
      compiler_params=pltpu.CompilerParams(
          dimension_semantics=("parallel", "arbitrary"),
          vmem_limit_bytes=32 * 1024 * 1024),
  )(embedded_p, ekT, ecb, wflat, bflat,
    emb2hid_w, emb2hid_b, attn_h2e_w, attn_h2e_b, attn_e2h_w, attn_e2h_b,
    hid2emb_w, hid2emb_b, fc_w, fc_b)

  return out_p[:, :T, :V], attn_p[:, :T, :S]


# --------------------------------------------------------------------------
# Pure-JAX reference (f32, mirrors the PyTorch module) for a numeric check
# --------------------------------------------------------------------------
def decoder_reference(params, trg, encoder_conved, encoder_combined,
                      kernel_size, trg_pad_idx, n_layers):
  B, T = trg.shape
  H = params["emb2hid_w"].shape[1]
  tok = jnp.take(params["tok_emb"], trg, axis=0)
  pos = params["pos_emb"][:T][None, :, :]
  embedded = tok + pos
  conv_inp = embedded @ params["emb2hid_w"] + params["emb2hid_b"]
  attention = None
  for l in range(n_layers):
    pad = jnp.full((B, kernel_size - 1, H), float(trg_pad_idx), jnp.float32)
    xp = jnp.concatenate([pad, conv_inp], axis=1)                 # (B, T+k-1, H)
    y = params["conv_b"][l][None, None, :]
    for j in range(kernel_size):
      y = y + jnp.einsum("bth,ho->bto", xp[:, j:j + T, :], params["conv_w"][l, j])
    conved = y[..., :H] * jax.nn.sigmoid(y[..., H:])              # GLU
    conved_emb = conved @ params["attn_h2e_w"] + params["attn_h2e_b"]
    combined = (conved_emb + embedded) * SCALE
    energy = jnp.einsum("bte,bse->bts", combined, encoder_conved)
    attention = jax.nn.softmax(energy, axis=-1)
    attended = jnp.einsum("bts,bse->bte", attention, encoder_combined)
    attended = attended @ params["attn_e2h_w"] + params["attn_e2h_b"]
    conved = (conved + attended) * SCALE
    conv_inp = (conved + conv_inp) * SCALE
  conved = conv_inp @ params["hid2emb_w"] + params["hid2emb_b"]
  output = conved @ params["fc_out_w"] + params["fc_out_b"]
  return output, attention


# --------------------------------------------------------------------------
def init_params(key, output_dim, emb_dim, hid_dim, n_layers, kernel_size,
                max_length):
  ks = jax.random.split(key, 16)
  s = 0.1
  return {
      "tok_emb":    s * jax.random.normal(ks[0], (output_dim, emb_dim), jnp.float32),
      "pos_emb":    s * jax.random.normal(ks[1], (max_length, emb_dim), jnp.float32),
      "emb2hid_w":  s * jax.random.normal(ks[2], (emb_dim, hid_dim), jnp.float32),
      "emb2hid_b":  s * jax.random.normal(ks[3], (hid_dim,), jnp.float32),
      "hid2emb_w":  s * jax.random.normal(ks[4], (hid_dim, emb_dim), jnp.float32),
      "hid2emb_b":  s * jax.random.normal(ks[5], (emb_dim,), jnp.float32),
      "attn_h2e_w": s * jax.random.normal(ks[6], (hid_dim, emb_dim), jnp.float32),
      "attn_h2e_b": s * jax.random.normal(ks[7], (emb_dim,), jnp.float32),
      "attn_e2h_w": s * jax.random.normal(ks[8], (emb_dim, hid_dim), jnp.float32),
      "attn_e2h_b": s * jax.random.normal(ks[9], (hid_dim,), jnp.float32),
      "fc_out_w":   s * jax.random.normal(ks[10], (emb_dim, output_dim), jnp.float32),
      "fc_out_b":   s * jax.random.normal(ks[11], (output_dim,), jnp.float32),
      # conv weight kept as (n_layers, k, hid, 2*hid): W[l, j, c, o] == torch W_l[o, c, j]
      "conv_w":     s * jax.random.normal(ks[12], (n_layers, kernel_size, hid_dim, 2 * hid_dim), jnp.float32),
      "conv_b":     s * jax.random.normal(ks[13], (n_layers, 2 * hid_dim), jnp.float32),
  }


if __name__ == "__main__":
  output_dim = 40     # target vocab size
  emb_dim = 32
  hid_dim = 32
  n_layers = 2
  kernel_size = 3
  trg_pad_idx = 1
  max_length = 50
  B, T, S = 2, 8, 12  # batch, target len, source len

  key = jax.random.PRNGKey(0)
  kp, k_trg, k_ec, k_eb = jax.random.split(key, 4)
  params = init_params(kp, output_dim, emb_dim, hid_dim, n_layers,
                       kernel_size, max_length)

  trg = jax.random.randint(k_trg, (B, T), 0, output_dim, dtype=jnp.int32)
  encoder_conved = jax.random.normal(k_ec, (B, S, emb_dim), jnp.float32)
  encoder_combined = jax.random.normal(k_eb, (B, S, emb_dim), jnp.float32)

  output, attention = decoder_forward(
      params, trg, encoder_conved, encoder_combined,
      kernel_size, trg_pad_idx, n_layers)
  jax.block_until_ready((output, attention))

  assert output.shape == (B, T, output_dim)
  assert attention.shape == (B, T, S)

  # correctness vs f32 reference (bf16 matmul operands => small drift)
  ref_out, ref_attn = decoder_reference(
      params, trg, encoder_conved, encoder_combined,
      kernel_size, trg_pad_idx, n_layers)
  assert float(jnp.max(jnp.abs(output - ref_out))) < 1e-1
  assert float(jnp.max(jnp.abs(attention - ref_attn))) < 1.5e-1

  print("KERNEL_OK")
</pallas_src>

<mosaic_0001>
module attributes {stable_mosaic.version = 11 : i64} {
  func.func @_decoder_fused_kernel(%arg0: i32, %arg1: i32, %arg2: memref<1x8x128xf32, #tpu.memory_space<vmem>>, %arg3: memref<1x128x128xbf16, #tpu.memory_space<vmem>>, %arg4: memref<1x128x128xbf16, #tpu.memory_space<vmem>>, %arg5: memref<1x384x256xbf16, #tpu.memory_space<vmem>>, %arg6: memref<1x1x256xf32, #tpu.memory_space<vmem>>, %arg7: memref<128x128xbf16, #tpu.memory_space<vmem>>, %arg8: memref<1x128xf32, #tpu.memory_space<vmem>>, %arg9: memref<128x128xbf16, #tpu.memory_space<vmem>>, %arg10: memref<1x128xf32, #tpu.memory_space<vmem>>, %arg11: memref<128x128xbf16, #tpu.memory_space<vmem>>, %arg12: memref<1x128xf32, #tpu.memory_space<vmem>>, %arg13: memref<128x128xbf16, #tpu.memory_space<vmem>>, %arg14: memref<1x128xf32, #tpu.memory_space<vmem>>, %arg15: memref<128x128xbf16, #tpu.memory_space<vmem>>, %arg16: memref<1x128xf32, #tpu.memory_space<vmem>>, %arg17: memref<1x8x128xf32, #tpu.memory_space<vmem>>, %arg18: memref<1x8x128xf32, #tpu.memory_space<vmem>>, %arg19: memref<16x128xf32, #tpu.memory_space<vmem>>) attributes {dimension_semantics = [#tpu.dimension_semantics<parallel>, #tpu.dimension_semantics<arbitrary>], iteration_bounds = array<i64: 2, 2>, scalar_prefetch = 0 : i64, scratch_operands = 1 : i64, tpu.core_type = #tpu.core_type<tc>, window_params = [{transform_indices = @transform_0, window_bounds = array<i64: 1, 8, 128>}, {transform_indices = @transform_1, window_bounds = array<i64: 1, 128, 128>}, {transform_indices = @transform_2, window_bounds = array<i64: 1, 128, 128>}, {transform_indices = @transform_3, window_bounds = array<i64: 1, 384, 256>}, {transform_indices = @transform_4, window_bounds = array<i64: 1, 1, 256>}, {pipeline_mode = #tpu.pipeline_mode<synchronous>, transform_indices = @transform_5, window_bounds = array<i64: 128, 128>}, {pipeline_mode = #tpu.pipeline_mode<synchronous>, transform_indices = @transform_6, window_bounds = array<i64: 1, 128>}, {pipeline_mode = #tpu.pipeline_mode<synchronous>, transform_indices = @transform_7, window_bounds = array<i64: 128, 128>}, {pipeline_mode = #tpu.pipeline_mode<synchronous>, transform_indices = @transform_8, window_bounds = array<i64: 1, 128>}, {pipeline_mode = #tpu.pipeline_mode<synchronous>, transform_indices = @transform_9, window_bounds = array<i64: 128, 128>}, {pipeline_mode = #tpu.pipeline_mode<synchronous>, transform_indices = @transform_10, window_bounds = array<i64: 1, 128>}, {pipeline_mode = #tpu.pipeline_mode<synchronous>, transform_indices = @transform_11, window_bounds = array<i64: 128, 128>}, {pipeline_mode = #tpu.pipeline_mode<synchronous>, transform_indices = @transform_12, window_bounds = array<i64: 1, 128>}, {pipeline_mode = #tpu.pipeline_mode<synchronous>, transform_indices = @transform_13, window_bounds = array<i64: 128, 128>}, {pipeline_mode = #tpu.pipeline_mode<synchronous>, transform_indices = @transform_14, window_bounds = array<i64: 1, 128>}, {transform_indices = @transform_15, window_bounds = array<i64: 1, 8, 128>}, {transform_indices = @transform_16, window_bounds = array<i64: 1, 8, 128>}]} {
    %c0 = arith.constant 0 : index
    %c0_0 = arith.constant 0 : index
    %c0_1 = arith.constant 0 : index
    %0 = vector.load %arg2[%c0, %c0_0, %c0_1] : memref<1x8x128xf32, #tpu.memory_space<vmem>>, vector<1x8x128xf32>
    %1 = vector.shape_cast %0 : vector<1x8x128xf32> to vector<8x128xf32>
    %c0_i32 = arith.constant 0 : i32
    %2 = arith.cmpi eq, %arg1, %c0_i32 : i32
    %3 = arith.extui %2 : i1 to i32
    %c0_i32_2 = arith.constant 0 : i32
    %4 = arith.cmpi ne, %3, %c0_i32_2 : i32
    scf.if %4 {
      %cst_38 = arith.constant 1.000000e+00 : f32
      %75 = vector.broadcast %cst_38 : f32 to vector<8x128xf32>
      %c0_39 = arith.constant 0 : index
      %c0_40 = arith.constant 0 : index
      %76 = vector.load %arg19[%c0_39, %c0_40] : memref<16x128xf32, #tpu.memory_space<vmem>>, vector<8x128xf32>
      tpu.vector_store %arg19[%c0_39, %c0_40], %75 {strides = array<i32>} : memref<16x128xf32, #tpu.memory_space<vmem>>, vector<8x128xf32>,
      %77 = arith.truncf %1 : vector<8x128xf32> to vector<8x128xbf16>
      %c0_41 = arith.constant 0 : index
      %c0_42 = arith.constant 0 : index
      %78 = vector.load %arg7[%c0_41, %c0_42] : memref<128x128xbf16, #tpu.memory_space<vmem>>, vector<128x128xbf16>
      %cst_43 = arith.constant dense<0.000000e+00> : vector<8x128xf32>
      %79 = tpu.matmul %77, %78, %cst_43 {dimension_numbers = #tpu.dot_dimension_numbers<[1], [0], [0], [1], [0, 0, 1, 1], [], []>} : vector<8x128xbf16>, vector<128x128xbf16>, vector<8x128xf32> -> vector<8x128xf32>
      %c0_44 = arith.constant 0 : index
      %c0_45 = arith.constant 0 : index
      %80 = vector.load %arg8[%c0_44, %c0_45] : memref<1x128xf32, #tpu.memory_space<vmem>>, vector<1x128xf32>
      %81 = vector.broadcast %80 : vector<1x128xf32> to vector<8x128xf32>
      %82 = arith.addf %79, %81 : vector<8x128xf32>
      %c8_46 = arith.constant 8 : index
      %c0_47 = arith.constant 0 : index
      %83 = vector.load %arg19[%c8_46, %c0_47] : memref<16x128xf32, #tpu.memory_space<vmem>>, vector<8x128xf32>
      tpu.vector_store %arg19[%c8_46, %c0_47], %82 {strides = array<i32>} : memref<16x128xf32, #tpu.memory_space<vmem>>, vector<8x128xf32>,
    } else {
    }
    %c0_3 = arith.constant 0 : index
    %c0_4 = arith.constant 0 : index
    %5 = vector.load %arg19[%c0_3, %c0_4] : memref<16x128xf32, #tpu.memory_space<vmem>>, vector<16x128xf32>
    %6 = vector.extract_strided_slice %5 {offsets = [8, 0], sizes = [8, 128], strides = [1, 1]} : vector<16x128xf32> to vector<8x128xf32>
    %7 = vector.extract_strided_slice %5 {offsets = [6, 0], sizes = [8, 128], strides = [1, 1]} : vector<16x128xf32> to vector<8x128xf32>
    %8 = vector.extract_strided_slice %5 {offsets = [7, 0], sizes = [8, 128], strides = [1, 1]} : vector<16x128xf32> to vector<8x128xf32>
    %9 = vector.extract_strided_slice %5 {offsets = [8, 0], sizes = [8, 128], strides = [1, 1]} : vector<16x128xf32> to vector<8x128xf32>
    %10 = tpu.concatenate %7, %8, %9 in 1 : vector<8x128xf32>, vector<8x128xf32>, vector<8x128xf32> -> vector<8x384xf32>
    %11 = arith.truncf %10 : vector<8x384xf32> to vector<8x384xbf16>
    %c0_5 = arith.constant 0 : index
    %c0_6 = arith.constant 0 : index
    %c0_7 = arith.constant 0 : index
    %12 = vector.load %arg5[%c0_5, %c0_6, %c0_7] : memref<1x384x256xbf16, #tpu.memory_space<vmem>>, vector<1x384x256xbf16>
    %13 = vector.shape_cast %12 : vector<1x384x256xbf16> to vector<384x256xbf16>
    %cst = arith.constant dense<0.000000e+00> : vector<8x256xf32>
    %14 = tpu.matmul %11, %13, %cst {dimension_numbers = #tpu.dot_dimension_numbers<[1], [0], [0], [1], [0, 0, 1, 1], [], []>} : vector<8x384xbf16>, vector<384x256xbf16>, vector<8x256xf32> -> vector<8x256xf32>
    %c0_8 = arith.constant 0 : index
    %c0_9 = arith.constant 0 : index
    %c0_10 = arith.constant 0 : index
    %15 = vector.load %arg6[%c0_8, %c0_9, %c0_10] : memref<1x1x256xf32, #tpu.memory_space<vmem>>, vector<1x1x256xf32>
    %16 = vector.shape_cast %15 : vector<1x1x256xf32> to vector<1x256xf32>
    %17 = vector.broadcast %16 : vector<1x256xf32> to vector<8x256xf32>
    %18 = arith.addf %14, %17 : vector<8x256xf32>
    %19 = vector.extract_strided_slice %18 {offsets = [0, 0], sizes = [8, 128], strides = [1, 1]} : vector<8x256xf32> to vector<8x128xf32>
    %20 = vector.extract_strided_slice %18 {offsets = [0, 128], sizes = [8, 128], strides = [1, 1]} : vector<8x256xf32> to vector<8x128xf32>
    %21 = arith.negf %20 : vector<8x128xf32>
    %22 = math.exp %21 : vector<8x128xf32>
    %cst_11 = arith.constant 1.000000e+00 : f32
    %23 = vector.broadcast %cst_11 : f32 to vector<8x128xf32>
    %24 = arith.addf %23, %22 : vector<8x128xf32>
    %25 = arith.divf %23, %24 : vector<8x128xf32>
    %26 = arith.mulf %19, %25 : vector<8x128xf32>
    %27 = arith.truncf %26 : vector<8x128xf32> to vector<8x128xbf16>
    %c0_12 = arith.constant 0 : index
    %c0_13 = arith.constant 0 : index
    %28 = vector.load %arg9[%c0_12, %c0_13] : memref<128x128xbf16, #tpu.memory_space<vmem>>, vector<128x128xbf16>
    %cst_14 = arith.constant dense<0.000000e+00> : vector<8x128xf32>
    %29 = tpu.matmul %27, %28, %cst_14 {dimension_numbers = #tpu.dot_dimension_numbers<[1], [0], [0], [1], [0, 0, 1, 1], [], []>} : vector<8x128xbf16>, vector<128x128xbf16>, vector<8x128xf32> -> vector<8x128xf32>
    %c0_15 = arith.constant 0 : index
    %c0_16 = arith.constant 0 : index
    %30 = vector.load %arg10[%c0_15, %c0_16] : memref<1x128xf32, #tpu.memory_space<vmem>>, vector<1x128xf32>
    %31 = vector.broadcast %30 : vector<1x128xf32> to vector<8x128xf32>
    %32 = arith.addf %29, %31 : vector<8x128xf32>
    %33 = arith.addf %32, %1 : vector<8x128xf32>
    %cst_17 = arith.constant 0.707106769 : f32
    %34 = vector.broadcast %cst_17 : f32 to vector<8x128xf32>
    %35 = arith.mulf %33, %34 : vector<8x128xf32>
    %36 = arith.truncf %35 : vector<8x128xf32> to vector<8x128xbf16>
    %c0_18 = arith.constant 0 : index
    %c0_19 = arith.constant 0 : index
    %c0_20 = arith.constant 0 : index
    %37 = vector.load %arg3[%c0_18, %c0_19, %c0_20] : memref<1x128x128xbf16, #tpu.memory_space<vmem>>, vector<1x128x128xbf16>
    %38 = vector.shape_cast %37 : vector<1x128x128xbf16> to vector<128x128xbf16>
    %cst_21 = arith.constant dense<0.000000e+00> : vector<8x128xf32>
    %39 = tpu.matmul %36, %38, %cst_21 {dimension_numbers = #tpu.dot_dimension_numbers<[1], [0], [0], [1], [0, 0, 1, 1], [], []>} : vector<8x128xbf16>, vector<128x128xbf16>, vector<8x128xf32> -> vector<8x128xf32>
    %40 = tpu.iota {dimensions = array<i32: 1>} : vector<8x128xi32>
    %c12_i32 = arith.constant 12 : i32
    %41 = vector.broadcast %c12_i32 : i32 to vector<8x128xi32>
    %42 = arith.cmpi slt, %40, %41 : vector<8x128xi32>
    %cst_22 = arith.constant -1.000000e+30 : f32
    %43 = vector.broadcast %cst_22 : f32 to vector<8x128xf32>
    %44 = arith.select %42, %39, %43 : vector<8x128xi1>, vector<8x128xf32>
    %cst_23 = arith.constant dense<0xFF800000> : vector<8xf32>
    %45 = vector.multi_reduction <maximumf>, %44, %cst_23 [1] : vector<8x128xf32> to vector<8xf32>
    %46 = vector.shape_cast %45 : vector<8xf32> to vector<8x1xf32>
    %47 = vector.broadcast %46 : vector<8x1xf32> to vector<8x128xf32>
    %48 = arith.subf %44, %47 : vector<8x128xf32>
    %49 = math.exp %48 : vector<8x128xf32>
    %cst_24 = arith.constant dense<0.000000e+00> : vector<8xf32>
    %50 = vector.multi_reduction <add>, %49, %cst_24 [1] : vector<8x128xf32> to vector<8xf32>
    %51 = vector.shape_cast %50 : vector<8xf32> to vector<8x1xf32>
    %52 = tpu.reciprocal %51 {approx = true} : vector<8x1xf32> -> vector<8x1xf32>
    %53 = vector.broadcast %52 : vector<8x1xf32> to vector<8x128xf32>
    %54 = arith.mulf %49, %53 : vector<8x128xf32>
    %55 = arith.truncf %54 : vector<8x128xf32> to vector<8x128xbf16>
    %c0_25 = arith.constant 0 : index
    %c0_26 = arith.constant 0 : index
    %c0_27 = arith.constant 0 : index
    %56 = vector.load %arg4[%c0_25, %c0_26, %c0_27] : memref<1x128x128xbf16, #tpu.memory_space<vmem>>, vector<1x128x128xbf16>
    %57 = vector.shape_cast %56 : vector<1x128x128xbf16> to vector<128x128xbf16>
    %cst_28 = arith.constant dense<0.000000e+00> : vector<8x128xf32>
    %58 = tpu.matmul %55, %57, %cst_28 {dimension_numbers = #tpu.dot_dimension_numbers<[1], [0], [0], [1], [0, 0, 1, 1], [], []>} : vector<8x128xbf16>, vector<128x128xbf16>, vector<8x128xf32> -> vector<8x128xf32>
    %59 = arith.truncf %58 : vector<8x128xf32> to vector<8x128xbf16>
    %c0_29 = arith.constant 0 : index
    %c0_30 = arith.constant 0 : index
    %60 = vector.load %arg11[%c0_29, %c0_30] : memref<128x128xbf16, #tpu.memory_space<vmem>>, vector<128x128xbf16>
    %cst_31 = arith.constant dense<0.000000e+00> : vector<8x128xf32>
    %61 = tpu.matmul %59, %60, %cst_31 {dimension_numbers = #tpu.dot_dimension_numbers<[1], [0], [0], [1], [0, 0, 1, 1], [], []>} : vector<8x128xbf16>, vector<128x128xbf16>, vector<8x128xf32> -> vector<8x128xf32>
    %c0_32 = arith.constant 0 : index
    %c0_33 = arith.constant 0 : index
    %62 = vector.load %arg12[%c0_32, %c0_33] : memref<1x128xf32, #tpu.memory_space<vmem>>, vector<1x128xf32>
    %63 = vector.broadcast %62 : vector<1x128xf32> to vector<8x128xf32>
    %64 = arith.addf %61, %63 : vector<8x128xf32>
    %65 = arith.addf %26, %64 : vector<8x128xf32>
    %cst_34 = arith.constant 0.707106769 : f32
    %66 = vector.broadcast %cst_34 : f32 to vector<8x128xf32>
    %67 = arith.mulf %65, %66 : vector<8x128xf32>
    %68 = arith.addf %67, %6 : vector<8x128xf32>
    %cst_35 = arith.constant 0.707106769 : f32
    %69 = vector.broadcast %cst_35 : f32 to vector<8x128xf32>
    %70 = arith.mulf %68, %69 : vector<8x128xf32>
    %c8 = arith.constant 8 : index
    %c0_36 = arith.constant 0 : index
    %71 = vector.load %arg19[%c8, %c0_36] : memref<16x128xf32, #tpu.memory_space<vmem>>, vector<8x128xf32>
    tpu.vector_store %arg19[%c8, %c0_36], %70 {strides = array<i32>} : memref<16x128xf32, #tpu.memory_space<vmem>>, vector<8x128xf32>,
    %c1_i32 = arith.constant 1 : i32
    %72 = arith.cmpi eq, %arg1, %c1_i32 : i32
    %73 = arith.extui %72 : i1 to i32
    %c0_i32_37 = arith.constant 0 : i32
    %74 = arith.cmpi ne, %73, %c0_i32_37 : i32
    scf.if %74 {
      %75 = arith.truncf %70 : vector<8x128xf32> to vector<8x128xbf16>
      %c0_38 = arith.constant 0 : index
      %c0_39 = arith.constant 0 : index
      %76 = vector.load %arg13[%c0_38, %c0_39] : memref<128x128xbf16, #tpu.memory_space<vmem>>, vector<128x128xbf16>
      %cst_40 = arith.constant dense<0.000000e+00> : vector<8x128xf32>
      %77 = tpu.matmul %75, %76, %cst_40 {dimension_numbers = #tpu.dot_dimension_numbers<[1], [0], [0], [1], [0, 0, 1, 1], [], []>} : vector<8x128xbf16>, vector<128x128xbf16>, vector<8x128xf32> -> vector<8x128xf32>
      %c0_41 = arith.constant 0 : index
      %c0_42 = arith.constant 0 : index
      %78 = vector.load %arg14[%c0_41, %c0_42] : memref<1x128xf32, #tpu.memory_space<vmem>>, vector<1x128xf32>
      %79 = vector.broadcast %78 : vector<1x128xf32> to vector<8x128xf32>
      %80 = arith.addf %77, %79 : vector<8x128xf32>
      %81 = arith.truncf %80 : vector<8x128xf32> to vector<8x128xbf16>
      %c0_43 = arith.constant 0 : index
      %c0_44 = arith.constant 0 : index
      %82 = vector.load %arg15[%c0_43, %c0_44] : memref<128x128xbf16, #tpu.memory_space<vmem>>, vector<128x128xbf16>
      %cst_45 = arith.constant dense<0.000000e+00> : vector<8x128xf32>
      %83 = tpu.matmul %81, %82, %cst_45 {dimension_numbers = #tpu.dot_dimension_numbers<[1], [0], [0], [1], [0, 0, 1, 1], [], []>} : vector<8x128xbf16>, vector<128x128xbf16>, vector<8x128xf32> -> vector<8x128xf32>
      %c0_46 = arith.constant 0 : index
      %c0_47 = arith.constant 0 : index
      %84 = vector.load %arg16[%c0_46, %c0_47] : memref<1x128xf32, #tpu.memory_space<vmem>>, vector<1x128xf32>
      %85 = vector.broadcast %84 : vector<1x128xf32> to vector<8x128xf32>
      %86 = arith.addf %83, %85 : vector<8x128xf32>
      %c0_48 = arith.constant 0 : index
      %c0_49 = arith.constant 0 : index
      %c0_50 = arith.constant 0 : index
      %87 = vector.load %arg17[%c0_48, %c0_49, %c0_50] : memref<1x8x128xf32, #tpu.memory_space<vmem>>, vector<1x8x128xf32>
      %88 = vector.shape_cast %87 : vector<1x8x128xf32> to vector<8x128xf32>
      %89 = vector.shape_cast %86 : vector<8x128xf32> to vector<1x8x128xf32>
      tpu.vector_store %arg17[%c0_48, %c0_49, %c0_50], %89 {strides = array<i32>} : memref<1x8x128xf32, #tpu.memory_space<vmem>>, vector<1x8x128xf32>,
      %c0_51 = arith.constant 0 : index
      %c0_52 = arith.constant 0 : index
      %c0_53 = arith.constant 0 : index
      %90 = vector.load %arg18[%c0_51, %c0_52, %c0_53] : memref<1x8x128xf32, #tpu.memory_space<vmem>>, vector<1x8x128xf32>
      %91 = vector.shape_cast %90 : vector<1x8x128xf32> to vector<8x128xf32>
      %92 = vector.shape_cast %54 : vector<8x128xf32> to vector<1x8x128xf32>
      tpu.vector_store %arg18[%c0_51, %c0_52, %c0_53], %92 {strides = array<i32>} : memref<1x8x128xf32, #tpu.memory_space<vmem>>, vector<1x8x128xf32>,
    } else {
    }
    return
  }
  func.func @transform_0(%arg0: i32, %arg1: i32) -> (i32, i32, i32) {
    %c0_i32 = arith.constant 0 : i32
    %c0_i32_0 = arith.constant 0 : i32
    %c0_i32_1 = arith.constant 0 : i32
    return %arg0, %c0_i32, %c0_i32_0 : i32, i32, i32
  }
  func.func @transform_1(%arg0: i32, %arg1: i32) -> (i32, i32, i32) {
    %c0_i32 = arith.constant 0 : i32
    %c0_i32_0 = arith.constant 0 : i32
    %c0_i32_1 = arith.constant 0 : i32
    return %arg0, %c0_i32, %c0_i32_0 : i32, i32, i32
  }
  func.func @transform_2(%arg0: i32, %arg1: i32) -> (i32, i32, i32) {
    %c0_i32 = arith.constant 0 : i32
    %c0_i32_0 = arith.constant 0 : i32
    %c0_i32_1 = arith.constant 0 : i32
    return %arg0, %c0_i32, %c0_i32_0 : i32, i32, i32
  }
  func.func @transform_3(%arg0: i32, %arg1: i32) -> (i32, i32, i32) {
    %c0_i32 = arith.constant 0 : i32
    %c0_i32_0 = arith.constant 0 : i32
    %c0_i32_1 = arith.constant 0 : i32
    return %arg1, %c0_i32, %c0_i32_0 : i32, i32, i32
  }
  func.func @transform_4(%arg0: i32, %arg1: i32) -> (i32, i32, i32) {
    %c0_i32 = arith.constant 0 : i32
    %c0_i32_0 = arith.constant 0 : i32
    %c0_i32_1 = arith.constant 0 : i32
    return %arg1, %c0_i32, %c0_i32_0 : i32, i32, i32
  }
  func.func @transform_5(%arg0: i32, %arg1: i32) -> (i32, i32) {
    %c0_i32 = arith.constant 0 : i32
    %c0_i32_0 = arith.constant 0 : i32
    %c0_i32_1 = arith.constant 0 : i32
    return %c0_i32, %c0_i32_0 : i32, i32
  }
  func.func @transform_6(%arg0: i32, %arg1: i32) -> (i32, i32) {
    %c0_i32 = arith.constant 0 : i32
    %c0_i32_0 = arith.constant 0 : i32
    %c0_i32_1 = arith.constant 0 : i32
    return %c0_i32, %c0_i32_0 : i32, i32
  }
  func.func @transform_7(%arg0: i32, %arg1: i32) -> (i32, i32) {
    %c0_i32 = arith.constant 0 : i32
    %c0_i32_0 = arith.constant 0 : i32
    %c0_i32_1 = arith.constant 0 : i32
    return %c0_i32, %c0_i32_0 : i32, i32
  }
  func.func @transform_8(%arg0: i32, %arg1: i32) -> (i32, i32) {
    %c0_i32 = arith.constant 0 : i32
    %c0_i32_0 = arith.constant 0 : i32
    %c0_i32_1 = arith.constant 0 : i32
    return %c0_i32, %c0_i32_0 : i32, i32
  }
  func.func @transform_9(%arg0: i32, %arg1: i32) -> (i32, i32) {
    %c0_i32 = arith.constant 0 : i32
    %c0_i32_0 = arith.constant 0 : i32
    %c0_i32_1 = arith.constant 0 : i32
    return %c0_i32, %c0_i32_0 : i32, i32
  }
  func.func @transform_10(%arg0: i32, %arg1: i32) -> (i32, i32) {
    %c0_i32 = arith.constant 0 : i32
    %c0_i32_0 = arith.constant 0 : i32
    %c0_i32_1 = arith.constant 0 : i32
    return %c0_i32, %c0_i32_0 : i32, i32
  }
  func.func @transform_11(%arg0: i32, %arg1: i32) -> (i32, i32) {
    %c0_i32 = arith.constant 0 : i32
    %c0_i32_0 = arith.constant 0 : i32
    %c0_i32_1 = arith.constant 0 : i32
    return %c0_i32, %c0_i32_0 : i32, i32
  }
  func.func @transform_12(%arg0: i32, %arg1: i32) -> (i32, i32) {
    %c0_i32 = arith.constant 0 : i32
    %c0_i32_0 = arith.constant 0 : i32
    %c0_i32_1 = arith.constant 0 : i32
    return %c0_i32, %c0_i32_0 : i32, i32
  }
  func.func @transform_13(%arg0: i32, %arg1: i32) -> (i32, i32) {
    %c0_i32 = arith.constant 0 : i32
    %c0_i32_0 = arith.constant 0 : i32
    %c0_i32_1 = arith.constant 0 : i32
    return %c0_i32, %c0_i32_0 : i32, i32
  }
  func.func @transform_14(%arg0: i32, %arg1: i32) -> (i32, i32) {
    %c0_i32 = arith.constant 0 : i32
    %c0_i32_0 = arith.constant 0 : i32
    %c0_i32_1 = arith.constant 0 : i32
    return %c0_i32, %c0_i32_0 : i32, i32
  }
  func.func @transform_15(%arg0: i32, %arg1: i32) -> (i32, i32, i32) {
    %c0_i32 = arith.constant 0 : i32
    %c0_i32_0 = arith.constant 0 : i32
    %c0_i32_1 = arith.constant 0 : i32
    return %arg0, %c0_i32, %c0_i32_0 : i32, i32, i32
  }
  func.func @transform_16(%arg0: i32, %arg1: i32) -> (i32, i32, i32) {
    %c0_i32 = arith.constant 0 : i32
    %c0_i32_0 = arith.constant 0 : i32
    %c0_i32_1 = arith.constant 0 : i32
    return %arg0, %c0_i32, %c0_i32_0 : i32, i32, i32
  }
}

</mosaic_0001>

<llo_original>
// kernel: tpu_custom_call.1
$region0: #{tpu_custom_call.1}
  #allocation0 [shape = 'u32[]', space=smem, size = 0x4, offset = 0x4, fixed_abs, tag = 'smem constant byte address 0x4 - core index']
  #allocation1 [shape = 'u32[144,128]{1,0:T(1,128)}', space=vmem, size = 0x12000, scoped, tag = 'internal scratch']
  #allocation2 [shape = 'f32[16,128]{1,0:T(8,128)}', space=vmem, size = 0x2000, scoped, tag = 'scratch operand']
  %s0 = inlined_call_operand.hbm [shape: f32[2,8,128], index: 0, kind: input, shape index: {}]
  %s1 = inlined_call_operand.hbm [shape: bf16[2,128,128], index: 1, kind: input, shape index: {}]
  %s2 = inlined_call_operand.hbm [shape: bf16[2,128,128], index: 2, kind: input, shape index: {}]
  %s3 = inlined_call_operand.hbm [shape: bf16[2,384,256], index: 3, kind: input, shape index: {}]
  %s4 = inlined_call_operand.vmem [shape: f32[2,1,256], index: 4, kind: input, shape index: {}]
  %s5 = inlined_call_operand.hbm [shape: bf16[128,128], index: 5, kind: input, shape index: {}]
  %s6 = inlined_call_operand.vmem [shape: f32[1,128], index: 6, kind: input, shape index: {}]
  %s7 = inlined_call_operand.hbm [shape: bf16[128,128], index: 7, kind: input, shape index: {}]
  %s8 = inlined_call_operand.vmem [shape: f32[1,128], index: 8, kind: input, shape index: {}]
  %s9 = inlined_call_operand.hbm [shape: bf16[128,128], index: 9, kind: input, shape index: {}]
  %s10 = inlined_call_operand.vmem [shape: f32[1,128], index: 10, kind: input, shape index: {}]
  %s11 = inlined_call_operand.hbm [shape: bf16[128,128], index: 11, kind: input, shape index: {}]
  %s12 = inlined_call_operand.vmem [shape: f32[1,128], index: 12, kind: input, shape index: {}]
  %s13 = inlined_call_operand.hbm [shape: bf16[128,128], index: 13, kind: input, shape index: {}]
  %s14 = inlined_call_operand.vmem [shape: f32[1,128], index: 14, kind: input, shape index: {}]
  %s15 = inlined_call_operand.hbm [shape: f32[2,8,128], index: 15, kind: output, shape index: {0}]
  %s16 = inlined_call_operand.hbm [shape: f32[2,8,128], index: 16, kind: output, shape index: {1}]
  %17 = xla_tuple %s15, %s16
  %s18 = sld [smem:[#allocation0]]
  $region145: #{tpu_custom_call.1} parent=0
    _
  %s20 = ssub.s32 1, %s18
  %s21 = scalar_select 0, %s20, %s18
  $region1: #{tpu_custom_call.1} parent=0
    #allocation3 [shape = 'u8[8192]{0}', space=vmem, size = 0x2000, scoped, tag = 'input window, operand 0']
    #allocation4 [shape = 's32[2]{0}', space=sflag, size = 0x8, scoped, tag = 'scoped memory for tpu_custom_call.1']
    #allocation5 [shape = 's32[2]{0}', space=sflag, size = 0x8, scoped, tag = 'scoped memory for tpu_custom_call.1']
    #allocation6 [shape = 'u8[65536]{0}', space=vmem, size = 0x10000, scoped, tag = 'input window, operand 1']
    #allocation7 [shape = 's32[2]{0}', space=sflag, size = 0x8, scoped, tag = 'scoped memory for tpu_custom_call.1']
    #allocation8 [shape = 'u8[65536]{0}', space=vmem, size = 0x10000, scoped, tag = 'input window, operand 2']
    #allocation9 [shape = 'u8[393216]{0}', space=vmem, size = 0x60000, scoped, tag = 'input window, operand 3']
    #allocation10 [shape = 's32[2]{0}', space=sflag, size = 0x8, scoped, tag = 'scoped memory for tpu_custom_call.1']
    #allocation11 [shape = 'u8[32768]{0}', space=vmem, size = 0x8000, scoped, tag = 'input window, operand 5, single buffered']
    #allocation12 [shape = 'u8[32768]{0}', space=vmem, size = 0x8000, scoped, tag = 'input window, operand 7, single buffered']
    #allocation13 [shape = 's32[1]{0}', space=sflag, size = 0x4, scoped, tag = 'scoped memory for tpu_custom_call.1']
    #allocation14 [shape = 'u8[32768]{0}', space=vmem, size = 0x8000, scoped, tag = 'input window, operand 9, single buffered']
    #allocation15 [shape = 'u8[32768]{0}', space=vmem, size = 0x8000, scoped, tag = 'input window, operand 11, single buffered']
    #allocation16 [shape = 's32[1]{0}', space=sflag, size = 0x4, scoped, tag = 'scoped memory for tpu_custom_call.1']
    #allocation17 [shape = 'u8[32768]{0}', space=vmem, size = 0x8000, scoped, tag = 'input window, operand 13, single buffered']
    #allocation18 [shape = 'u8[8192]{0}', space=vmem, size = 0x2000, scoped, tag = 'output window, operand 0']
    #allocation19 [shape = 'u8[8192]{0}', space=vmem, size = 0x2000, scoped, tag = 'output window, operand 1']
    #allocation20 [shape = 's32[2]{0}', space=sflag, size = 0x8, scoped, tag = 'scoped memory for tpu_custom_call.1']
    %22 = vsyncpa [#allocation4], 0
    %s23 = scalar_lea.sflag [#allocation4], 1
    %24 = vsyncpa %s23, 0
    %25 = vsyncpa [#allocation7], 0
    %s26 = scalar_lea.sflag [#allocation7], 1
    %27 = vsyncpa %s26, 0
    %28 = vsyncpa [#allocation10], 0
    %s29 = scalar_lea.sflag [#allocation10], 1
    %30 = vsyncpa %s29, 0
    %31 = vsyncpa [#allocation13], 0
    %32 = vsyncpa [#allocation16], 0
    %33 = vsyncpa [#allocation5], 0
    %s34 = scalar_lea.sflag [#allocation5], 1
    %35 = vsyncpa %s34, 0
    %36 = vsyncpa [#allocation20], 0
    %s37 = scalar_lea.sflag [#allocation20], 1
    %38 = vsyncpa %s37, 0
    loop: start=0, step=1, limit=6
    $region2: #{tpu_custom_call.1} parent=1 // loop_pre_header
      _
    $region3: #{tpu_custom_call.1} parent=1 // loop_header
      %s40 = sphi 0, %s44
      %p41 = scmp.ge.s32.totalorder %s40, 6
      %s47 = sphi 0, %s59
      %s48 = sphi 0, %s55
      %s49 = sphi 0, %s47
      %s50 = sphi 0, %s48
      %s51 = sphi 0, %s49
      %s52 = sphi 0, %s50
      %s62 = sphi 0, %s64
      %s65 = sphi 0, %s62
      %s66 = sphi 0, %s65
      %s82 = sphi 0, %s66
      %s88 = sphi 0, %s90
      %s91 = sphi 0, %s88
      %s92 = sphi 0, %s91
      %s108 = sphi 0, %s92
      %s114 = sphi 0, %s116
      %s117 = sphi 0, %s114
      %s118 = sphi 0, %s117
      %s134 = sphi 0, %s118
      %s140 = sphi 0, %s142
      %s143 = sphi 0, %s140
      %s144 = sphi 0, %s143
      %s160 = sphi 0, %s144
      %s166 = sphi 0, %s168
      %s169 = sphi 0, %s166
      %s170 = sphi 0, %s169
      %s186 = sphi 0, %s170
      %s190 = sphi 0, %s190
      %s192 = sphi 0, %s190
      %s193 = sphi 0, %s192
      %s207 = sphi 0, %s193
      %s211 = sphi 0, %s211
      %s213 = sphi 0, %s211
      %s214 = sphi 0, %s213
      %s228 = sphi 0, %s214
      %s232 = sphi 0, %s232
      %s234 = sphi 0, %s232
      %s235 = sphi 0, %s234
      %s249 = sphi 0, %s235
      %s253 = sphi 0, %s253
      %s255 = sphi 0, %s253
      %s256 = sphi 0, %s255
      %s270 = sphi 0, %s256
      %s274 = sphi 0, %s274
      %s276 = sphi 0, %s274
      %s277 = sphi 0, %s276
      %s291 = sphi 0, %s277
      %s295 = sphi 0, %s295
      %s297 = sphi 0, %s295
      %s298 = sphi 0, %s297
      %s312 = sphi 0, %s298
      %s316 = sphi 0, %s316
      %s318 = sphi 0, %s316
      %s319 = sphi 0, %s318
      %s333 = sphi 0, %s319
      %s337 = sphi 0, %s337
      %s339 = sphi 0, %s337
      %s340 = sphi 0, %s339
      %s354 = sphi 0, %s340
      %s358 = sphi 0, %s358
      %s360 = sphi 0, %s358
      %s361 = sphi 0, %s360
      %s375 = sphi 0, %s361
      %s379 = sphi 0, %s379
      %s381 = sphi 0, %s379
      %s382 = sphi 0, %s381
      %s396 = sphi 0, %s382
      %s402 = sphi 0, %s404
      %s405 = sphi 0, %s402
      %s406 = sphi 0, %s405
      %s422 = sphi 0, %s406
      %s428 = sphi 0, %s430
      %s431 = sphi 0, %s428
      %s432 = sphi 0, %s431
      %s448 = sphi 0, %s432
    $region4: #{tpu_custom_call.1} parent=1 // loop_header_branch
      %43 = sbr.rel (%p41) target = $region8
    $region5: #{tpu_custom_call.1} parent=1 // loop_body
      %s45 = ssub.s32 %s40, 1
      %s46 = ssub.s32 %s40, 2
      %s53 = sadd.s32 1, %s48
      %p54 = scmp.ge.s32.totalorder %s53, 2
      %s55 = scalar_select %p54, 0, %s53
      %s56 = sadd.s32 1, %s47
      %s57 = scalar_select %p54, %s56, %s47
      %p58 = scmp.ge.s32.totalorder %s57, 2
      %s59 = scalar_select %p58, 0, %s57
      %s60 = ssub.s32 %s47, %s59
      %p61 = scmp.eq.s32.totalorder %s60, 0
      %s63 = sadd.s32 %s62, 1
      %s64 = scalar_select %p61, %s62, %s63
      %p67 = pneg %p61
      %p68 = scmp.eq.s32.totalorder %s40, 3
      %p69 = por %p67, %p68
      %p70 = scmp.ne.s32.totalorder %s62, %s65
      %p71 = scmp.eq.s32.totalorder %s40, 0
      %p72 = por %p70, %p71
      %p73 = scmp.ne.s32.totalorder %s62, %s65
      %p74 = scmp.eq.s32.totalorder %s45, 3
      %p75 = por %p73, %p74
      %p76 = scmp.ne.s32.totalorder %s65, %s66
      %p77 = scmp.eq.s32.totalorder %s45, 0
      %p78 = por %p76, %p77
      %p79 = scmp.ne.s32.totalorder %s65, %s66
      %p80 = scmp.eq.s32.totalorder %s46, 3
      %p81 = por %p79, %p80
      %p83 = scmp.ne.s32.totalorder %s66, %s82
      %p84 = scmp.eq.s32.totalorder %s46, 0
      %p85 = por %p83, %p84
      %s86 = ssub.s32 %s47, %s59
      %p87 = scmp.eq.s32.totalorder %s86, 0
      %s89 = sadd.s32 %s88, 1
      %s90 = scalar_select %p87, %s88, %s89
      %p93 = pneg %p87
      %p94 = scmp.eq.s32.totalorder %s40, 3
      %p95 = por %p93, %p94
      %p96 = scmp.ne.s32.totalorder %s88, %s91
      %p97 = scmp.eq.s32.totalorder %s40, 0
      %p98 = por %p96, %p97
      %p99 = scmp.ne.s32.totalorder %s88, %s91
      %p100 = scmp.eq.s32.totalorder %s45, 3
      %p101 = por %p99, %p100
      %p102 = scmp.ne.s32.totalorder %s91, %s92
      %p103 = scmp.eq.s32.totalorder %s45, 0
      %p104 = por %p102, %p103
      %p105 = scmp.ne.s32.totalorder %s91, %s92
      %p106 = scmp.eq.s32.totalorder %s46, 3
      %p107 = por %p105, %p106
      %p109 = scmp.ne.s32.totalorder %s92, %s108
      %p110 = scmp.eq.s32.totalorder %s46, 0
      %p111 = por %p109, %p110
      %s112 = ssub.s32 %s47, %s59
      %p113 = scmp.eq.s32.totalorder %s112, 0
      %s115 = sadd.s32 %s114, 1
      %s116 = scalar_select %p113, %s114, %s115
      %p119 = pneg %p113
      %p120 = scmp.eq.s32.totalorder %s40, 3
      %p121 = por %p119, %p120
      %p122 = scmp.ne.s32.totalorder %s114, %s117
      %p123 = scmp.eq.s32.totalorder %s40, 0
      %p124 = por %p122, %p123
      %p125 = scmp.ne.s32.totalorder %s114, %s117
      %p126 = scmp.eq.s32.totalorder %s45, 3
      %p127 = por %p125, %p126
      %p128 = scmp.ne.s32.totalorder %s117, %s118
      %p129 = scmp.eq.s32.totalorder %s45, 0
      %p130 = por %p128, %p129
      %p131 = scmp.ne.s32.totalorder %s117, %s118
      %p132 = scmp.eq.s32.totalorder %s46, 3
      %p133 = por %p131, %p132
      %p135 = scmp.ne.s32.totalorder %s118, %s134
      %p136 = scmp.eq.s32.totalorder %s46, 0
      %p137 = por %p135, %p136
      %s138 = ssub.s32 %s48, %s55
      %p139 = scmp.eq.s32.totalorder %s138, 0
      %s141 = sadd.s32 %s140, 1
      %s142 = scalar_select %p139, %s140, %s141
      %p145 = pneg %p139
      %p146 = scmp.eq.s32.totalorder %s40, 3
      %p147 = por %p145, %p146
      %p148 = scmp.ne.s32.totalorder %s140, %s143
      %p149 = scmp.eq.s32.totalorder %s40, 0
      %p150 = por %p148, %p149
      %p151 = scmp.ne.s32.totalorder %s140, %s143
      %p152 = scmp.eq.s32.totalorder %s45, 3
      %p153 = por %p151, %p152
      %p154 = scmp.ne.s32.totalorder %s143, %s144
      %p155 = scmp.eq.s32.totalorder %s45, 0
      %p156 = por %p154, %p155
      %p157 = scmp.ne.s32.totalorder %s143, %s144
      %p158 = scmp.eq.s32.totalorder %s46, 3
      %p159 = por %p157, %p158
      %p161 = scmp.ne.s32.totalorder %s144, %s160
      %p162 = scmp.eq.s32.totalorder %s46, 0
      %p163 = por %p161, %p162
      %s164 = ssub.s32 %s48, %s55
      %p165 = scmp.eq.s32.totalorder %s164, 0
      %s167 = sadd.s32 %s166, 1
      %s168 = scalar_select %p165, %s166, %s167
      %p171 = pneg %p165
      %p172 = scmp.eq.s32.totalorder %s40, 3
      %p173 = por %p171, %p172
      %p174 = scmp.ne.s32.totalorder %s166, %s169
      %p175 = scmp.eq.s32.totalorder %s40, 0
      %p176 = por %p174, %p175
      %p177 = scmp.ne.s32.totalorder %s166, %s169
      %p178 = scmp.eq.s32.totalorder %s45, 3
      %p179 = por %p177, %p178
      %p180 = scmp.ne.s32.totalorder %s169, %s170
      %p181 = scmp.eq.s32.totalorder %s45, 0
      %p182 = por %p180, %p181
      %p183 = scmp.ne.s32.totalorder %s169, %s170
      %p184 = scmp.eq.s32.totalorder %s46, 3
      %p185 = por %p183, %p184
      %p187 = scmp.ne.s32.totalorder %s170, %s186
      %p188 = scmp.eq.s32.totalorder %s46, 0
      %p189 = por %p187, %p188
      %s191 = sadd.s32 %s190, 1
      %p194 = scmp.eq.s32.totalorder %s40, 3
      %p195 = scmp.ne.s32.totalorder %s190, %s192
      %p196 = scmp.eq.s32.totalorder %s40, 0
      %p197 = por %p195, %p196
      %p198 = scmp.ne.s32.totalorder %s190, %s192
      %p199 = scmp.eq.s32.totalorder %s45, 3
      %p200 = por %p198, %p199
      %p201 = scmp.ne.s32.totalorder %s192, %s193
      %p202 = scmp.eq.s32.totalorder %s45, 0
      %p203 = por %p201, %p202
      %p204 = scmp.ne.s32.totalorder %s192, %s193
      %p205 = scmp.eq.s32.totalorder %s46, 3
      %p206 = por %p204, %p205
      %p208 = scmp.ne.s32.totalorder %s193, %s207
      %p209 = scmp.eq.s32.totalorder %s46, 0
      %p210 = por %p208, %p209
      %s212 = sadd.s32 %s211, 1
      %p215 = scmp.eq.s32.totalorder %s40, 3
      %p216 = scmp.ne.s32.totalorder %s211, %s213
      %p217 = scmp.eq.s32.totalorder %s40, 0
      %p218 = por %p216, %p217
      %p219 = scmp.ne.s32.totalorder %s211, %s213
      %p220 = scmp.eq.s32.totalorder %s45, 3
      %p221 = por %p219, %p220
      %p222 = scmp.ne.s32.totalorder %s213, %s214
      %p223 = scmp.eq.s32.totalorder %s45, 0
      %p224 = por %p222, %p223
      %p225 = scmp.ne.s32.totalorder %s213, %s214
      %p226 = scmp.eq.s32.totalorder %s46, 3
      %p227 = por %p225, %p226
      %p229 = scmp.ne.s32.totalorder %s214, %s228
      %p230 = scmp.eq.s32.totalorder %s46, 0
      %p231 = por %p229, %p230
      %s233 = sadd.s32 %s232, 1
      %p236 = scmp.eq.s32.totalorder %s40, 3
      %p237 = scmp.ne.s32.totalorder %s232, %s234
      %p238 = scmp.eq.s32.totalorder %s40, 0
      %p239 = por %p237, %p238
      %p240 = scmp.ne.s32.totalorder %s232, %s234
      %p241 = scmp.eq.s32.totalorder %s45, 3
      %p242 = por %p240, %p241
      %p243 = scmp.ne.s32.totalorder %s234, %s235
      %p244 = scmp.eq.s32.totalorder %s45, 0
      %p245 = por %p243, %p244
      %p246 = scmp.ne.s32.totalorder %s234, %s235
      %p247 = scmp.eq.s32.totalorder %s46, 3
      %p248 = por %p246, %p247
      %p250 = scmp.ne.s32.totalorder %s235, %s249
      %p251 = scmp.eq.s32.totalorder %s46, 0
      %p252 = por %p250, %p251
      %s254 = sadd.s32 %s253, 1
      %p257 = scmp.eq.s32.totalorder %s40, 3
      %p258 = scmp.ne.s32.totalorder %s253, %s255
      %p259 = scmp.eq.s32.totalorder %s40, 0
      %p260 = por %p258, %p259
      %p261 = scmp.ne.s32.totalorder %s253, %s255
      %p262 = scmp.eq.s32.totalorder %s45, 3
      %p263 = por %p261, %p262
      %p264 = scmp.ne.s32.totalorder %s255, %s256
      %p265 = scmp.eq.s32.totalorder %s45, 0
      %p266 = por %p264, %p265
      %p267 = scmp.ne.s32.totalorder %s255, %s256
      %p268 = scmp.eq.s32.totalorder %s46, 3
      %p269 = por %p267, %p268
      %p271 = scmp.ne.s32.totalorder %s256, %s270
      %p272 = scmp.eq.s32.totalorder %s46, 0
      %p273 = por %p271, %p272
      %s275 = sadd.s32 %s274, 1
      %p278 = scmp.eq.s32.totalorder %s40, 3
      %p279 = scmp.ne.s32.totalorder %s274, %s276
      %p280 = scmp.eq.s32.totalorder %s40, 0
      %p281 = por %p279, %p280
      %p282 = scmp.ne.s32.totalorder %s274, %s276
      %p283 = scmp.eq.s32.totalorder %s45, 3
      %p284 = por %p282, %p283
      %p285 = scmp.ne.s32.totalorder %s276, %s277
      %p286 = scmp.eq.s32.totalorder %s45, 0
      %p287 = por %p285, %p286
      %p288 = scmp.ne.s32.totalorder %s276, %s277
      %p289 = scmp.eq.s32.totalorder %s46, 3
      %p290 = por %p288, %p289
      %p292 = scmp.ne.s32.totalorder %s277, %s291
      %p293 = scmp.eq.s32.totalorder %s46, 0
      %p294 = por %p292, %p293
      %s296 = sadd.s32 %s295, 1
      %p299 = scmp.eq.s32.totalorder %s40, 3
      %p300 = scmp.ne.s32.totalorder %s295, %s297
      %p301 = scmp.eq.s32.totalorder %s40, 0
      %p302 = por %p300, %p301
      %p303 = scmp.ne.s32.totalorder %s295, %s297
      %p304 = scmp.eq.s32.totalorder %s45, 3
      %p305 = por %p303, %p304
      %p306 = scmp.ne.s32.totalorder %s297, %s298
      %p307 = scmp.eq.s32.totalorder %s45, 0
      %p308 = por %p306, %p307
      %p309 = scmp.ne.s32.totalorder %s297, %s298
      %p310 = scmp.eq.s32.totalorder %s46, 3
      %p311 = por %p309, %p310
      %p313 = scmp.ne.s32.totalorder %s298, %s312
      %p314 = scmp.eq.s32.totalorder %s46, 0
      %p315 = por %p313, %p314
      %s317 = sadd.s32 %s316, 1
      %p320 = scmp.eq.s32.totalorder %s40, 3
      %p321 = scmp.ne.s32.totalorder %s316, %s318
      %p322 = scmp.eq.s32.totalorder %s40, 0
      %p323 = por %p321, %p322
      %p324 = scmp.ne.s32.totalorder %s316, %s318
      %p325 = scmp.eq.s32.totalorder %s45, 3
      %p326 = por %p324, %p325
      %p327 = scmp.ne.s32.totalorder %s318, %s319
      %p328 = scmp.eq.s32.totalorder %s45, 0
      %p329 = por %p327, %p328
      %p330 = scmp.ne.s32.totalorder %s318, %s319
      %p331 = scmp.eq.s32.totalorder %s46, 3
      %p332 = por %p330, %p331
      %p334 = scmp.ne.s32.totalorder %s319, %s333
      %p335 = scmp.eq.s32.totalorder %s46, 0
      %p336 = por %p334, %p335
      %s338 = sadd.s32 %s337, 1
      %p341 = scmp.eq.s32.totalorder %s40, 3
      %p342 = scmp.ne.s32.totalorder %s337, %s339
      %p343 = scmp.eq.s32.totalorder %s40, 0
      %p344 = por %p342, %p343
      %p345 = scmp.ne.s32.totalorder %s337, %s339
      %p346 = scmp.eq.s32.totalorder %s45, 3
      %p347 = por %p345, %p346
      %p348 = scmp.ne.s32.totalorder %s339, %s340
      %p349 = scmp.eq.s32.totalorder %s45, 0
      %p350 = por %p348, %p349
      %p351 = scmp.ne.s32.totalorder %s339, %s340
      %p352 = scmp.eq.s32.totalorder %s46, 3
      %p353 = por %p351, %p352
      %p355 = scmp.ne.s32.totalorder %s340, %s354
      %p356 = scmp.eq.s32.totalorder %s46, 0
      %p357 = por %p355, %p356
      %s359 = sadd.s32 %s358, 1
      %p362 = scmp.eq.s32.totalorder %s40, 3
      %p363 = scmp.ne.s32.totalorder %s358, %s360
      %p364 = scmp.eq.s32.totalorder %s40, 0
      %p365 = por %p363, %p364
      %p366 = scmp.ne.s32.totalorder %s358, %s360
      %p367 = scmp.eq.s32.totalorder %s45, 3
      %p368 = por %p366, %p367
      %p369 = scmp.ne.s32.totalorder %s360, %s361
      %p370 = scmp.eq.s32.totalorder %s45, 0
      %p371 = por %p369, %p370
      %p372 = scmp.ne.s32.totalorder %s360, %s361
      %p373 = scmp.eq.s32.totalorder %s46, 3
      %p374 = por %p372, %p373
      %p376 = scmp.ne.s32.totalorder %s361, %s375
      %p377 = scmp.eq.s32.totalorder %s46, 0
      %p378 = por %p376, %p377
      %s380 = sadd.s32 %s379, 1
      %p383 = scmp.eq.s32.totalorder %s40, 3
      %p384 = scmp.ne.s32.totalorder %s379, %s381
      %p385 = scmp.eq.s32.totalorder %s40, 0
      %p386 = por %p384, %p385
      %p387 = scmp.ne.s32.totalorder %s379, %s381
      %p388 = scmp.eq.s32.totalorder %s45, 3
      %p389 = por %p387, %p388
      %p390 = scmp.ne.s32.totalorder %s381, %s382
      %p391 = scmp.eq.s32.totalorder %s45, 0
      %p392 = por %p390, %p391
      %p393 = scmp.ne.s32.totalorder %s381, %s382
      %p394 = scmp.eq.s32.totalorder %s46, 3
      %p395 = por %p393, %p394
      %p397 = scmp.ne.s32.totalorder %s382, %s396
      %p398 = scmp.eq.s32.totalorder %s46, 0
      %p399 = por %p397, %p398
      %s400 = ssub.s32 %s47, %s59
      %p401 = scmp.eq.s32.totalorder %s400, 0
      %s403 = sadd.s32 %s402, 1
      %s404 = scalar_select %p401, %s402, %s403
      %p407 = pneg %p401
      %p408 = scmp.eq.s32.totalorder %s40, 3
      %p409 = por %p407, %p408
      %p410 = scmp.ne.s32.totalorder %s402, %s405
      %p411 = scmp.eq.s32.totalorder %s40, 0
      %p412 = por %p410, %p411
      %p413 = scmp.ne.s32.totalorder %s402, %s405
      %p414 = scmp.eq.s32.totalorder %s45, 3
      %p415 = por %p413, %p414
      %p416 = scmp.ne.s32.totalorder %s405, %s406
      %p417 = scmp.eq.s32.totalorder %s45, 0
      %p418 = por %p416, %p417
      %p419 = scmp.ne.s32.totalorder %s405, %s406
      %p420 = scmp.eq.s32.totalorder %s46, 3
      %p421 = por %p419, %p420
      %p423 = scmp.ne.s32.totalorder %s406, %s422
      %p424 = scmp.eq.s32.totalorder %s46, 0
      %p425 = por %p423, %p424
      %s426 = ssub.s32 %s47, %s59
      %p427 = scmp.eq.s32.totalorder %s426, 0
      %s429 = sadd.s32 %s428, 1
      %s430 = scalar_select %p427, %s428, %s429
      %p433 = pneg %p427
      %p434 = scmp.eq.s32.totalorder %s40, 3
      %p435 = por %p433, %p434
      %p436 = scmp.ne.s32.totalorder %s428, %s431
      %p437 = scmp.eq.s32.totalorder %s40, 0
      %p438 = por %p436, %p437
      %p439 = scmp.ne.s32.totalorder %s428, %s431
      %p440 = scmp.eq.s32.totalorder %s45, 3
      %p441 = por %p439, %p440
      %p442 = scmp.ne.s32.totalorder %s431, %s432
      %p443 = scmp.eq.s32.totalorder %s45, 0
      %p444 = por %p442, %p443
      %p445 = scmp.ne.s32.totalorder %s431, %s432
      %p446 = scmp.eq.s32.totalorder %s46, 3
      %p447 = por %p445, %p446
      %p449 = scmp.ne.s32.totalorder %s432, %s448
      %p450 = scmp.eq.s32.totalorder %s46, 0
      %p451 = por %p449, %p450
      %p452 = scmp.le.s32.totalorder 1, %s40
      %p453 = scmp.lt.s32.totalorder %s40, 5
      %p454 = pnand %p452, %p453
      %p455 = pneg %p454
      // Predicated region
      $region9: #{tpu_custom_call.1} parent=5 // pred_check
        _
      $region10: #{tpu_custom_call.1} parent=5 // pred_check_branch
        %457 = sbr.rel (%p454) target = $region12
      $region11: #{tpu_custom_call.1} parent=5 // pred_region
        %s458 = ssub.s32 %s40, 1
        // Predicated region
        $region13: #{tpu_custom_call.1} parent=11 // pred_check
          %p459 = pneg %p203
        $region14: #{tpu_custom_call.1} parent=11 // pred_check_branch
          %461 = sbr.rel (%p459) target = $region16
        $region15: #{tpu_custom_call.1} parent=11 // pred_region
          %s463 = ssub.s32 1024, 1024
          %464 = vsyncadd [#allocation10], %s463
          %s465 = sshll.u32 [#allocation11], 4
          %s466 = int_to_ptr.vmem [resolvable:$true] %s465
          %471 = dma.hbm_to_vmem [thread:$0]  %s5, 1024, %s466, [#allocation10], 64, 64, 4
        $region16: #{tpu_custom_call.1} parent=11 // pred_fallthru
          _
        // Predicated region
        $region17: #{tpu_custom_call.1} parent=11 // pred_check
          %p472 = pneg %p224
        $region18: #{tpu_custom_call.1} parent=11 // pred_check_branch
          %474 = sbr.rel (%p472) target = $region20
        $region19: #{tpu_custom_call.1} parent=11 // pred_region
          _
        $region20: #{tpu_custom_call.1} parent=11 // pred_fallthru
          _
        // Predicated region
        $region21: #{tpu_custom_call.1} parent=11 // pred_check
          %p475 = pneg %p245
        $region22: #{tpu_custom_call.1} parent=11 // pred_check_branch
          %477 = sbr.rel (%p475) target = $region24
        $region23: #{tpu_custom_call.1} parent=11 // pred_region
          %s479 = ssub.s32 1024, 1024
          %480 = vsyncadd [#allocation13], %s479
          %s481 = sshll.u32 [#allocation12], 4
          %s482 = int_to_ptr.vmem [resolvable:$true] %s481
          %487 = dma.hbm_to_vmem [thread:$0]  %s7, 1024, %s482, [#allocation13], 64, 64, 4
        $region24: #{tpu_custom_call.1} parent=11 // pred_fallthru
          _
        // Predicated region
        $region25: #{tpu_custom_call.1} parent=11 // pred_check
          %p488 = pneg %p266
        $region26: #{tpu_custom_call.1} parent=11 // pred_check_branch
          %490 = sbr.rel (%p488) target = $region28
        $region27: #{tpu_custom_call.1} parent=11 // pred_region
          _
        $region28: #{tpu_custom_call.1} parent=11 // pred_fallthru
          _
        // Predicated region
        $region29: #{tpu_custom_call.1} parent=11 // pred_check
          %p491 = pneg %p287
        $region30: #{tpu_custom_call.1} parent=11 // pred_check_branch
          %493 = sbr.rel (%p491) target = $region32
        $region31: #{tpu_custom_call.1} parent=11 // pred_region
          %s495 = ssub.s32 1024, 1024
          %496 = vsyncadd [#allocation13], %s495
          %s497 = sshll.u32 [#allocation14], 4
          %s498 = int_to_ptr.vmem [resolvable:$true] %s497
          %503 = dma.hbm_to_vmem [thread:$0]  %s9, 1024, %s498, [#allocation13], 64, 64, 4
        $region32: #{tpu_custom_call.1} parent=11 // pred_fallthru
          _
        // Predicated region
        $region33: #{tpu_custom_call.1} parent=11 // pred_check
          %p504 = pneg %p308
        $region34: #{tpu_custom_call.1} parent=11 // pred_check_branch
          %506 = sbr.rel (%p504) target = $region36
        $region35: #{tpu_custom_call.1} parent=11 // pred_region
          _
        $region36: #{tpu_custom_call.1} parent=11 // pred_fallthru
          _
        // Predicated region
        $region37: #{tpu_custom_call.1} parent=11 // pred_check
          %p507 = pneg %p329
        $region38: #{tpu_custom_call.1} parent=11 // pred_check_branch
          %509 = sbr.rel (%p507) target = $region40
        $region39: #{tpu_custom_call.1} parent=11 // pred_region
          %s511 = ssub.s32 1024, 1024
          %512 = vsyncadd [#allocation16], %s511
          %s513 = sshll.u32 [#allocation15], 4
          %s514 = int_to_ptr.vmem [resolvable:$true] %s513
          %519 = dma.hbm_to_vmem [thread:$0]  %s11, 1024, %s514, [#allocation16], 64, 64, 4
        $region40: #{tpu_custom_call.1} parent=11 // pred_fallthru
          _
        // Predicated region
        $region41: #{tpu_custom_call.1} parent=11 // pred_check
          %p520 = pneg %p350
        $region42: #{tpu_custom_call.1} parent=11 // pred_check_branch
          %522 = sbr.rel (%p520) target = $region44
        $region43: #{tpu_custom_call.1} parent=11 // pred_region
          _
        $region44: #{tpu_custom_call.1} parent=11 // pred_fallthru
          _
        // Predicated region
        $region45: #{tpu_custom_call.1} parent=11 // pred_check
          %p523 = pneg %p371
        $region46: #{tpu_custom_call.1} parent=11 // pred_check_branch
          %525 = sbr.rel (%p523) target = $region48
        $region47: #{tpu_custom_call.1} parent=11 // pred_region
          %s527 = ssub.s32 1024, 1024
          %528 = vsyncadd [#allocation16], %s527
          %s529 = sshll.u32 [#allocation17], 4
          %s530 = int_to_ptr.vmem [resolvable:$true] %s529
          %535 = dma.hbm_to_vmem [thread:$0]  %s13, 1024, %s530, [#allocation16], 64, 64, 4
        $region48: #{tpu_custom_call.1} parent=11 // pred_fallthru
          _
        // Predicated region
        $region49: #{tpu_custom_call.1} parent=11 // pred_check
          %p536 = pneg %p392
        $region50: #{tpu_custom_call.1} parent=11 // pred_check_branch
          %538 = sbr.rel (%p536) target = $region52
        $region51: #{tpu_custom_call.1} parent=11 // pred_region
          _
        $region52: #{tpu_custom_call.1} parent=11 // pred_fallthru
          _
      $region12: #{tpu_custom_call.1} parent=5 // pred_fallthru
        _
      %p539 = scmp.lt.s32.totalorder %s40, 4
      // Predicated region
      $region53: #{tpu_custom_call.1} parent=5 // pred_check
        %p540 = pneg %p539
      $region54: #{tpu_custom_call.1} parent=5 // pred_check_branch
        %542 = sbr.rel (%p540) target = $region56
      $region55: #{tpu_custom_call.1} parent=5 // pred_region
        // Predicated region
        $region57: #{tpu_custom_call.1} parent=55 // pred_check
          %p543 = pneg %p72
        $region58: #{tpu_custom_call.1} parent=55 // pred_check_branch
          %545 = sbr.rel (%p543) target = $region60
        $region59: #{tpu_custom_call.1} parent=55 // pred_region
          %s546 = sand.u32 %s62, 1
          %s547 = scalar_lea.sflag [#allocation4], %s546
          %s548 = sand.u32 %s62, 1
          %s549 = smul.addr %s548, 8
          %s550 = scalar_lea.vmem [#allocation3], %s549
          %s552 = ssub.s32 128, 128
          %553 = vsyncadd %s547, %s552
          %s554 = smul.addr %s47, 128
          %s555 = scalar_lea.hbm %s0, %s554
          %s557 = sshll.u32 %s550, 4
          %s558 = int_to_ptr.vmem [resolvable:$true] %s557
          %560 = dma.hbm_to_vmem [thread:$0]  %s555, 128, %s558, %s547
        $region60: #{tpu_custom_call.1} parent=55 // pred_fallthru
          _
        // Predicated region
        $region61: #{tpu_custom_call.1} parent=55 // pred_check
          %p561 = pneg %p98
        $region62: #{tpu_custom_call.1} parent=55 // pred_check_branch
          %563 = sbr.rel (%p561) target = $region64
        $region63: #{tpu_custom_call.1} parent=55 // pred_region
          %s564 = sand.u32 %s40, 1
          %s565 = scalar_lea.sflag [#allocation7], %s564
          %s566 = sand.u32 %s88, 1
          %s567 = smul.addr %s566, 64
          %s568 = scalar_lea.vmem [#allocation6], %s567
          %s570 = ssub.s32 1024, 1024
          %571 = vsyncadd %s565, %s570
          %s572 = smul.addr %s47, 16
          %s573 = smul.addr %s572, 64
          %s574 = scalar_lea.hbm %s1, %s573
          %s575 = sshll.u32 %s568, 4
          %s576 = int_to_ptr.vmem [resolvable:$true] %s575
          %581 = dma.hbm_to_vmem [thread:$0]  %s574, 1024, %s576, %s565, 64, 64, 4
        $region64: #{tpu_custom_call.1} parent=55 // pred_fallthru
          _
        // Predicated region
        $region65: #{tpu_custom_call.1} parent=55 // pred_check
          %p582 = pneg %p124
        $region66: #{tpu_custom_call.1} parent=55 // pred_check_branch
          %584 = sbr.rel (%p582) target = $region68
        $region67: #{tpu_custom_call.1} parent=55 // pred_region
          %s585 = sand.u32 %s40, 1
          %s586 = scalar_lea.sflag [#allocation7], %s585
          %s587 = sand.u32 %s114, 1
          %s588 = smul.addr %s587, 64
          %s589 = scalar_lea.vmem [#allocation8], %s588
          %s591 = ssub.s32 1024, 1024
          %592 = vsyncadd %s586, %s591
          %s593 = smul.addr %s47, 16
          %s594 = smul.addr %s593, 64
          %s595 = scalar_lea.hbm %s2, %s594
          %s596 = sshll.u32 %s589, 4
          %s597 = int_to_ptr.vmem [resolvable:$true] %s596
          %602 = dma.hbm_to_vmem [thread:$0]  %s595, 1024, %s597, %s586, 64, 64, 4
        $region68: #{tpu_custom_call.1} parent=55 // pred_fallthru
          _
        // Predicated region
        $region69: #{tpu_custom_call.1} parent=55 // pred_check
          %p603 = pneg %p150
        $region70: #{tpu_custom_call.1} parent=55 // pred_check_branch
          %605 = sbr.rel (%p603) target = $region72
        $region71: #{tpu_custom_call.1} parent=55 // pred_region
          %s606 = sand.u32 %s40, 1
          %s607 = scalar_lea.sflag [#allocation10], %s606
          %s608 = sand.u32 %s140, 1
          %s609 = smul.addr %s608, 384
          %s610 = scalar_lea.vmem [#allocation9], %s609
          %s612 = ssub.s32 6144, 6144
          %613 = vsyncadd %s607, %s612
          %s614 = smul.addr %s48, 96
          %s615 = smul.addr %s614, 64
          %s616 = scalar_lea.hbm %s3, %s615
          %s617 = sshll.u32 %s610, 4
          %s618 = int_to_ptr.vmem [resolvable:$true] %s617
          %623 = dma.hbm_to_vmem [thread:$0]  %s616, 6144, %s618, %s607, 128, 128, 8
        $region72: #{tpu_custom_call.1} parent=55 // pred_fallthru
          _
        // Predicated region
        $region73: #{tpu_custom_call.1} parent=55 // pred_check
          %p624 = pneg %p176
        $region74: #{tpu_custom_call.1} parent=55 // pred_check_branch
          %626 = sbr.rel (%p624) target = $region76
        $region75: #{tpu_custom_call.1} parent=55 // pred_region
          %p627 = scmp.lt.s32.totalorder %s48, 1
          %s628 = scalar_select %p627, %s48, 1
          %s629 = smul.addr %s628, 2
          %s630 = scalar_lea.vmem %s4, %s629
        $region76: #{tpu_custom_call.1} parent=55 // pred_fallthru
          _
      $region56: #{tpu_custom_call.1} parent=5 // pred_fallthru
        _
      %p631 = scmp.le.s32.totalorder 1, %s40
      %p632 = scmp.lt.s32.totalorder %s40, 5
      %p633 = pnand %p631, %p632
      %p634 = pneg %p633
      // Predicated region
      $region77: #{tpu_custom_call.1} parent=5 // pred_check
        _
      $region78: #{tpu_custom_call.1} parent=5 // pred_check_branch
        %636 = sbr.rel (%p633) target = $region80
      $region79: #{tpu_custom_call.1} parent=5 // pred_region
        %s637 = ssub.s32 %s40, 1
        %s638 = sand.u32 %s65, 1
        %s639 = scalar_lea.sflag [#allocation4], %s638
        %s640 = sand.u32 %s65, 1
        %s641 = smul.addr %s640, 8
        %s642 = scalar_lea.vmem [#allocation3], %s641
        // Predicated region
        $region81: #{tpu_custom_call.1} parent=79 // pred_check
          %p643 = pneg %p78
        $region82: #{tpu_custom_call.1} parent=79 // pred_check_branch
          %645 = sbr.rel (%p643) target = $region84
        $region83: #{tpu_custom_call.1} parent=79 // pred_region
          %646 = dma.done %s639, 128
        $region84: #{tpu_custom_call.1} parent=79 // pred_fallthru
          _
        %s647 = sand.u32 %s45, 1
        %s648 = scalar_lea.sflag [#allocation7], %s647
        %s649 = sand.u32 %s91, 1
        %s650 = smul.addr %s649, 64
        %s651 = scalar_lea.vmem [#allocation6], %s650
        // Predicated region
        $region85: #{tpu_custom_call.1} parent=79 // pred_check
          %p652 = pneg %p104
        $region86: #{tpu_custom_call.1} parent=79 // pred_check_branch
          %654 = sbr.rel (%p652) target = $region88
        $region87: #{tpu_custom_call.1} parent=79 // pred_region
          %655 = dma.done %s648, 1024
        $region88: #{tpu_custom_call.1} parent=79 // pred_fallthru
          _
        %s656 = sand.u32 %s45, 1
        %s657 = scalar_lea.sflag [#allocation7], %s656
        %s658 = sand.u32 %s117, 1
        %s659 = smul.addr %s658, 64
        %s660 = scalar_lea.vmem [#allocation8], %s659
        // Predicated region
        $region89: #{tpu_custom_call.1} parent=79 // pred_check
          %p661 = pneg %p130
        $region90: #{tpu_custom_call.1} parent=79 // pred_check_branch
          %663 = sbr.rel (%p661) target = $region92
        $region91: #{tpu_custom_call.1} parent=79 // pred_region
          %664 = dma.done %s657, 1024
        $region92: #{tpu_custom_call.1} parent=79 // pred_fallthru
          _
        %s665 = sand.u32 %s45, 1
        %s666 = scalar_lea.sflag [#allocation10], %s665
        %s667 = sand.u32 %s143, 1
        %s668 = smul.addr %s667, 384
        %s669 = scalar_lea.vmem [#allocation9], %s668
        // Predicated region
        $region93: #{tpu_custom_call.1} parent=79 // pred_check
          %p670 = pneg %p156
        $region94: #{tpu_custom_call.1} parent=79 // pred_check_branch
          %672 = sbr.rel (%p670) target = $region96
        $region95: #{tpu_custom_call.1} parent=79 // pred_region
          %673 = dma.done %s666, 6144
        $region96: #{tpu_custom_call.1} parent=79 // pred_fallthru
          _
        // Predicated region
        $region97: #{tpu_custom_call.1} parent=79 // pred_check
          %p674 = pneg %p203
        $region98: #{tpu_custom_call.1} parent=79 // pred_check_branch
          %676 = sbr.rel (%p674) target = $region100
        $region99: #{tpu_custom_call.1} parent=79 // pred_region
          %677 = dma.done [#allocation10], 1024
        $region100: #{tpu_custom_call.1} parent=79 // pred_fallthru
          _
        // Predicated region
        $region101: #{tpu_custom_call.1} parent=79 // pred_check
          %p678 = pneg %p245
        $region102: #{tpu_custom_call.1} parent=79 // pred_check_branch
          %680 = sbr.rel (%p678) target = $region104
        $region103: #{tpu_custom_call.1} parent=79 // pred_region
          %681 = dma.done [#allocation13], 1024
        $region104: #{tpu_custom_call.1} parent=79 // pred_fallthru
          _
        // Predicated region
        $region105: #{tpu_custom_call.1} parent=79 // pred_check
          %p682 = pneg %p287
        $region106: #{tpu_custom_call.1} parent=79 // pred_check_branch
          %684 = sbr.rel (%p682) target = $region108
        $region107: #{tpu_custom_call.1} parent=79 // pred_region
          %685 = dma.done [#allocation13], 1024
        $region108: #{tpu_custom_call.1} parent=79 // pred_fallthru
          _
        // Predicated region
        $region109: #{tpu_custom_call.1} parent=79 // pred_check
          %p686 = pneg %p329
        $region110: #{tpu_custom_call.1} parent=79 // pred_check_branch
          %688 = sbr.rel (%p686) target = $region112
        $region111: #{tpu_custom_call.1} parent=79 // pred_region
          %689 = dma.done [#allocation16], 1024
        $region112: #{tpu_custom_call.1} parent=79 // pred_fallthru
          _
        // Predicated region
        $region113: #{tpu_custom_call.1} parent=79 // pred_check
          %p690 = pneg %p371
        $region114: #{tpu_custom_call.1} parent=79 // pred_check_branch
          %692 = sbr.rel (%p690) target = $region116
        $region115: #{tpu_custom_call.1} parent=79 // pred_region
          %693 = dma.done [#allocation16], 1024
        $region116: #{tpu_custom_call.1} parent=79 // pred_fallthru
          _
        %s694 = sand.u32 %s65, 1
        %s695 = scalar_lea.sflag [#allocation4], %s694
        %s696 = sand.u32 %s65, 1
        %s697 = smul.addr %s696, 8
        %s698 = scalar_lea.vmem [#allocation3], %s697
        %p699 = pneg %p78
        %p700 = pneg %p75
        %s701 = sand.u32 %s45, 1
        %s702 = scalar_lea.sflag [#allocation7], %s701
        %s703 = sand.u32 %s91, 1
        %s704 = smul.addr %s703, 64
        %s705 = scalar_lea.vmem [#allocation6], %s704
        %p706 = pneg %p104
        %p707 = pneg %p101
        %s708 = sand.u32 %s45, 1
        %s709 = scalar_lea.sflag [#allocation7], %s708
        %s710 = sand.u32 %s117, 1
        %s711 = smul.addr %s710, 64
        %s712 = scalar_lea.vmem [#allocation8], %s711
        %p713 = pneg %p130
        %p714 = pneg %p127
        %s715 = sand.u32 %s45, 1
        %s716 = scalar_lea.sflag [#allocation10], %s715
        %s717 = sand.u32 %s143, 1
        %s718 = smul.addr %s717, 384
        %s719 = scalar_lea.vmem [#allocation9], %s718
        %p720 = pneg %p156
        %p721 = pneg %p153
        %p722 = scmp.lt.s32.totalorder %s50, 1
        %s723 = scalar_select %p722, %s50, 1
        %s724 = smul.addr %s723, 2
        %s725 = scalar_lea.vmem %s4, %s724
        %p726 = pneg %p182
        %p727 = pneg %p179
        %p728 = pneg %p203
        %p729 = pneg %p200
        %p730 = pneg %p224
        %p731 = pneg %p221
        %p732 = pneg %p245
        %p733 = pneg %p242
        %p734 = pneg %p266
        %p735 = pneg %p263
        %p736 = pneg %p287
        %p737 = pneg %p284
        %p738 = pneg %p308
        %p739 = pneg %p305
        %p740 = pneg %p329
        %p741 = pneg %p326
        %p742 = pneg %p350
        %p743 = pneg %p347
        %p744 = pneg %p371
        %p745 = pneg %p368
        %p746 = pneg %p392
        %p747 = pneg %p389
        %p748 = pneg %p418
        %p749 = pneg %p415
        %s750 = sand.u32 %s405, 1
        %s751 = scalar_lea.sflag [#allocation5], %s750
        %s752 = sand.u32 %s405, 1
        %s753 = smul.addr %s752, 8
        %s754 = scalar_lea.vmem [#allocation18], %s753
        %p755 = pneg %p444
        %p756 = pneg %p441
        %s757 = sand.u32 %s431, 1
        %s758 = scalar_lea.sflag [#allocation20], %s757
        %s759 = sand.u32 %s431, 1
        %s760 = smul.addr %s759, 8
        %s761 = scalar_lea.vmem [#allocation19], %s760
        %p762 = scmp.lt.s32.totalorder %s50, 1
        %s763 = scalar_select %p762, %s50, 1
        %s764 = smul.addr %s763, 2
        %s765 = scalar_lea.vmem %s4, %s764
        %v767 = vld [vmem:[%s642] sm:$0xff]
        %p768 = scmp.eq.s32.totalorder %s50, 0
        // Predicated region
        $region117: #{tpu_custom_call.1} parent=79 // pred_check
          %p769 = pneg %p768
        $region118: #{tpu_custom_call.1} parent=79 // pred_check_branch
          %771 = sbr.rel (%p769) target = $region120
        $region119: #{tpu_custom_call.1} parent=79 // pred_region
          %772 = vst [vmem:[#allocation2] sm:$0xff] 1.0
          %v773 = vpack.c.bf16 %v767, %v767
          %v774 = vld [vmem:[#allocation11] sm:$0xf]
          %v775 = vld [vmem:[#allocation11 + $0x4] sm:$0xf]
          %v776 = vld [vmem:[#allocation11 + $0x8] sm:$0xf]
          %v777 = vld [vmem:[#allocation11 + $0xc] sm:$0xf]
          %v778 = vld [vmem:[#allocation11 + $0x10] sm:$0xf]
          %v779 = vld [vmem:[#allocation11 + $0x14] sm:$0xf]
          %v780 = vld [vmem:[#allocation11 + $0x18] sm:$0xf]
          %v781 = vld [vmem:[#allocation11 + $0x1c] sm:$0xf]
          %v782 = vld [vmem:[#allocation11 + $0x20] sm:$0xf]
          %v783 = vld [vmem:[#allocation11 + $0x24] sm:$0xf]
          %v784 = vld [vmem:[#allocation11 + $0x28] sm:$0xf]
          %v785 = vld [vmem:[#allocation11 + $0x2c] sm:$0xf]
          %v786 = vld [vmem:[#allocation11 + $0x30] sm:$0xf]
          %v787 = vld [vmem:[#allocation11 + $0x34] sm:$0xf]
          %v788 = vld [vmem:[#allocation11 + $0x38] sm:$0xf]
          %v789 = vld [vmem:[#allocation11 + $0x3c] sm:$0xf]
          %v790 = vld [vmem:[%s6] sm:$0x1]
          %v792 = vlaneseq
          %v793 = vshrl.u32 %v792, 7
          %v794 = vsub.s32 0, %v793
          %v795 = vrot.slane %v790, %v794
          %v813 = vunpack.c.l.b16 %v774
          %v814 = vunpack.c.l.b16 %v775
          %v815 = vunpack.c.l.b16 %v776
          %v816 = vunpack.c.l.b16 %v777
          %v817 = vunpack.c.l.b16 %v778
          %v818 = vunpack.c.l.b16 %v779
          %v819 = vunpack.c.l.b16 %v780
          %v820 = vunpack.c.l.b16 %v781
          %v821 = vunpack.c.l.b16 %v782
          %v822 = vunpack.c.l.b16 %v783
          %v823 = vunpack.c.l.b16 %v784
          %v824 = vunpack.c.l.b16 %v785
          %v825 = vunpack.c.l.b16 %v786
          %v826 = vunpack.c.l.b16 %v787
          %v827 = vunpack.c.l.b16 %v788
          %v828 = vunpack.c.l.b16 %v789
          %v829 = vpack.c.b16 %v814, %v813
          %v830 = vpack.c.b16 %v816, %v815
          %v831 = vpack.c.b16 %v818, %v817
          %v832 = vpack.c.b16 %v820, %v819
          %v833 = vpack.c.b16 %v822, %v821
          %v834 = vpack.c.b16 %v824, %v823
          %v835 = vpack.c.b16 %v826, %v825
          %v836 = vpack.c.b16 %v828, %v827
          %845 = vmatprep.subr.bf16.mxu0 0
          %846 = vmatpush1.bf16.msra.mxu0 %v829
          %847 = vmatprep.subr.bf16.mxu0 0
          %848 = vmatpush1.bf16.msra.mxu0 %v830
          %849 = vmatprep.subr.bf16.mxu0 0
          %850 = vmatpush1.bf16.msra.mxu0 %v831
          %851 = vmatprep.subr.bf16.mxu0 0
          %852 = vmatpush1.bf16.msra.mxu0 %v832
          %853 = vmatprep.subr.bf16.mxu0 0
          %854 = vmatpush1.bf16.msra.mxu0 %v833
          %855 = vmatprep.subr.bf16.mxu0 0
          %856 = vmatpush1.bf16.msra.mxu0 %v834
          %857 = vmatprep.subr.bf16.mxu0 0
          %858 = vmatpush1.bf16.msra.mxu0 %v835
          %859 = vmatprep.subr.bf16.mxu0 0
          %860 = vmatpush1.bf16.msra.mxu0 %v836
          %861 = vmatprep.subr.bf16.mxu0 0
          %862 = vmatpush1.bf16.msra.mxu0 0
          %863 = vmatprep.subr.bf16.mxu0 0
          %864 = vmatpush1.bf16.msra.mxu0 0
          %865 = vmatprep.subr.bf16.mxu0 0
          %866 = vmatpush1.bf16.msra.mxu0 0
          %867 = vmatprep.subr.bf16.mxu0 0
          %868 = vmatpush1.bf16.msra.mxu0 0
          %869 = vmatprep.subr.bf16.mxu0 0
          %870 = vmatpush1.bf16.msra.mxu0 0
          %871 = vmatprep.subr.bf16.mxu0 0
          %872 = vmatpush1.bf16.msra.mxu0 0
          %873 = vmatprep.subr.bf16.mxu0 0
          %874 = vmatpush1.bf16.msra.mxu0 0
          %875 = vmatprep.subr.bf16.mxu0 0
          %876 = vmatpush1.bf16.msra.mxu0 0
          %877 = vmatprep.mubr.bf16.mxu0 0
          %878 = vmatmul.mubr.bf16.gmra.mrb[0].mxu0 %v773
          %v879 = vpop.f32.mrb[0].mxu0
          %v880 = vadd.f32 %v795, %v879
          %v881 = vpop.f32.mrb[0].mxu0
          %v882 = vpop.f32.mrb[0].mxu0
          %v883 = vpop.f32.mrb[0].mxu0
          %884 = vdwg.mxu0
          %885 = vst [vmem:[#allocation2 + $0x8] sm:$0xff] %v880
        $region120: #{tpu_custom_call.1} parent=79 // pred_fallthru
          _
        %v886 = vld [vmem:[#allocation2] sm:$0xff]
        %v887 = vld [vmem:[#allocation2 + $0x8] sm:$0xff]
        %vm890 = vcmask 1046528
        %v891 = vrot.slane %v886, 1
        %v892 = vrot.slane %v887, 1
        %v893 = vsel %vm890, %v891, %v892
        %v896 = vrot.slane %v887, 2
        %v898 = vpack.c.bf16 %v887, %v886
        %v899 = vpack.c.bf16 %v892, %v893
        %v900 = vpack.c.bf16 %v896, %v896
        %v901 = vld [vmem:[%s669] sm:$0xff]
        %v902 = vld [vmem:[%s669 + $0x8] sm:$0xff]
        %v903 = vld [vmem:[%s669 + $0x10] sm:$0xff]
        %v904 = vld [vmem:[%s669 + $0x18] sm:$0xff]
        %v905 = vld [vmem:[%s669 + $0x20] sm:$0xff]
        %v906 = vld [vmem:[%s669 + $0x28] sm:$0xff]
        %v907 = vld [vmem:[%s669 + $0x30] sm:$0xff]
        %v908 = vld [vmem:[%s669 + $0x38] sm:$0xff]
        %v909 = vld [vmem:[%s669 + $0x40] sm:$0xff]
        %v910 = vld [vmem:[%s669 + $0x48] sm:$0xff]
        %v911 = vld [vmem:[%s669 + $0x50] sm:$0xff]
        %v912 = vld [vmem:[%s669 + $0x58] sm:$0xff]
        %v913 = vld [vmem:[%s669 + $0x60] sm:$0xff]
        %v914 = vld [vmem:[%s669 + $0x68] sm:$0xff]
        %v915 = vld [vmem:[%s669 + $0x70] sm:$0xff]
        %v916 = vld [vmem:[%s669 + $0x78] sm:$0xff]
        %v917 = vld [vmem:[%s669 + $0x80] sm:$0xff]
        %v918 = vld [vmem:[%s669 + $0x88] sm:$0xff]
        %v919 = vld [vmem:[%s669 + $0x90] sm:$0xff]
        %v920 = vld [vmem:[%s669 + $0x98] sm:$0xff]
        %v921 = vld [vmem:[%s669 + $0xa0] sm:$0xff]
        %v922 = vld [vmem:[%s669 + $0xa8] sm:$0xff]
        %v923 = vld [vmem:[%s669 + $0xb0] sm:$0xff]
        %v924 = vld [vmem:[%s669 + $0xb8] sm:$0xff]
        %v925 = vld [vmem:[%s669 + $0xc0] sm:$0xff]
        %v926 = vld [vmem:[%s669 + $0xc8] sm:$0xff]
        %v927 = vld [vmem:[%s669 + $0xd0] sm:$0xff]
        %v928 = vld [vmem:[%s669 + $0xd8] sm:$0xff]
        %v929 = vld [vmem:[%s669 + $0xe0] sm:$0xff]
        %v930 = vld [vmem:[%s669 + $0xe8] sm:$0xff]
        %v931 = vld [vmem:[%s669 + $0xf0] sm:$0xff]
        %v932 = vld [vmem:[%s669 + $0xf8] sm:$0xff]
        %v933 = vld [vmem:[%s669 + $0x100] sm:$0xff]
        %v934 = vld [vmem:[%s669 + $0x108] sm:$0xff]
        %v935 = vld [vmem:[%s669 + $0x110] sm:$0xff]
        %v936 = vld [vmem:[%s669 + $0x118] sm:$0xff]
        %v937 = vld [vmem:[%s669 + $0x120] sm:$0xff]
        %v938 = vld [vmem:[%s669 + $0x128] sm:$0xff]
        %v939 = vld [vmem:[%s669 + $0x130] sm:$0xff]
        %v940 = vld [vmem:[%s669 + $0x138] sm:$0xff]
        %v941 = vld [vmem:[%s669 + $0x140] sm:$0xff]
        %v942 = vld [vmem:[%s669 + $0x148] sm:$0xff]
        %v943 = vld [vmem:[%s669 + $0x150] sm:$0xff]
        %v944 = vld [vmem:[%s669 + $0x158] sm:$0xff]
        %v945 = vld [vmem:[%s669 + $0x160] sm:$0xff]
        %v946 = vld [vmem:[%s669 + $0x168] sm:$0xff]
        %v947 = vld [vmem:[%s669 + $0x170] sm:$0xff]
        %v948 = vld [vmem:[%s669 + $0x178] sm:$0xff]
        %v949 = vld [vmem:[%s765] sm:$0x3]
        %v951 = vlaneseq
        %v952 = vshrl.u32 %v951, 7
        %v953 = vsub.s32 0, %v952
        %v954 = vrot.slane %v949, %v953
        %v955 = vlaneseq
        %v956 = vshrl.u32 %v955, 7
        %v957 = vsub.s32 1, %v956
        %v958 = vrot.slane %v949, %v957
        %v964 = vrot.slane %v898, 3
        %v965 = vrot.slane %v899, 3
        %v966 = vrot.slane %v900, 3
        %v1018 = vunpack.c.l.b16 %v901
        %v1019 = vunpack.c.h.b16 %v901
        %v1020 = vunpack.c.l.b16 %v902
        %v1021 = vunpack.c.h.b16 %v902
        %v1022 = vunpack.c.l.b16 %v903
        %v1023 = vunpack.c.h.b16 %v903
        %v1024 = vunpack.c.l.b16 %v904
        %v1025 = vunpack.c.h.b16 %v904
        %v1026 = vunpack.c.l.b16 %v905
        %v1027 = vunpack.c.h.b16 %v905
        %v1028 = vunpack.c.l.b16 %v906
        %v1029 = vunpack.c.h.b16 %v906
        %v1030 = vunpack.c.l.b16 %v907
        %v1031 = vunpack.c.h.b16 %v907
        %v1032 = vunpack.c.l.b16 %v908
        %v1033 = vunpack.c.h.b16 %v908
        %v1034 = vunpack.c.l.b16 %v909
        %v1035 = vunpack.c.h.b16 %v909
        %v1036 = vunpack.c.l.b16 %v910
        %v1037 = vunpack.c.h.b16 %v910
        %v1038 = vunpack.c.l.b16 %v911
        %v1039 = vunpack.c.h.b16 %v911
        %v1040 = vunpack.c.l.b16 %v912
        %v1041 = vunpack.c.h.b16 %v912
        %v1042 = vunpack.c.l.b16 %v913
        %v1043 = vunpack.c.h.b16 %v913
        %v1044 = vunpack.c.l.b16 %v914
        %v1045 = vunpack.c.h.b16 %v914
        %v1046 = vunpack.c.l.b16 %v915
        %v1047 = vunpack.c.h.b16 %v915
        %v1048 = vunpack.c.l.b16 %v916
        %v1049 = vunpack.c.h.b16 %v916
        %v1050 = vunpack.c.l.b16 %v917
        %v1051 = vunpack.c.h.b16 %v917
        %v1052 = vunpack.c.l.b16 %v918
        %v1053 = vunpack.c.h.b16 %v918
        %v1054 = vunpack.c.l.b16 %v919
        %v1055 = vunpack.c.h.b16 %v919
        %v1056 = vunpack.c.l.b16 %v920
        %v1057 = vunpack.c.h.b16 %v920
        %v1058 = vunpack.c.l.b16 %v921
        %v1059 = vunpack.c.h.b16 %v921
        %v1060 = vunpack.c.l.b16 %v922
        %v1061 = vunpack.c.h.b16 %v922
        %v1062 = vunpack.c.l.b16 %v923
        %v1063 = vunpack.c.h.b16 %v923
        %v1064 = vunpack.c.l.b16 %v924
        %v1065 = vunpack.c.h.b16 %v924
        %v1066 = vunpack.c.l.b16 %v925
        %v1067 = vunpack.c.h.b16 %v925
        %v1068 = vunpack.c.l.b16 %v926
        %v1069 = vunpack.c.h.b16 %v926
        %v1070 = vunpack.c.l.b16 %v927
        %v1071 = vunpack.c.h.b16 %v927
        %v1072 = vunpack.c.l.b16 %v928
        %v1073 = vunpack.c.h.b16 %v928
        %v1074 = vunpack.c.l.b16 %v929
        %v1075 = vunpack.c.h.b16 %v929
        %v1076 = vunpack.c.l.b16 %v930
        %v1077 = vunpack.c.h.b16 %v930
        %v1078 = vunpack.c.l.b16 %v931
        %v1079 = vunpack.c.h.b16 %v931
        %v1080 = vunpack.c.l.b16 %v932
        %v1081 = vunpack.c.h.b16 %v932
        %v1082 = vunpack.c.l.b16 %v933
        %v1083 = vunpack.c.h.b16 %v933
        %v1084 = vunpack.c.l.b16 %v934
        %v1085 = vunpack.c.h.b16 %v934
        %v1086 = vunpack.c.l.b16 %v935
        %v1087 = vunpack.c.h.b16 %v935
        %v1088 = vunpack.c.l.b16 %v936
        %v1089 = vunpack.c.h.b16 %v936
        %v1090 = vunpack.c.l.b16 %v937
        %v1091 = vunpack.c.h.b16 %v937
        %v1092 = vunpack.c.l.b16 %v938
        %v1093 = vunpack.c.h.b16 %v938
        %v1094 = vunpack.c.l.b16 %v939
        %v1095 = vunpack.c.h.b16 %v939
        %v1096 = vunpack.c.l.b16 %v940
        %v1097 = vunpack.c.h.b16 %v940
        %v1098 = vunpack.c.l.b16 %v941
        %v1099 = vunpack.c.h.b16 %v941
        %v1100 = vunpack.c.l.b16 %v942
        %v1101 = vunpack.c.h.b16 %v942
        %v1102 = vunpack.c.l.b16 %v943
        %v1103 = vunpack.c.h.b16 %v943
        %v1104 = vunpack.c.l.b16 %v944
        %v1105 = vunpack.c.h.b16 %v944
        %v1106 = vunpack.c.l.b16 %v945
        %v1107 = vunpack.c.h.b16 %v945
        %v1108 = vunpack.c.l.b16 %v946
        %v1109 = vunpack.c.h.b16 %v946
        %v1110 = vunpack.c.l.b16 %v947
        %v1111 = vunpack.c.h.b16 %v947
        %v1112 = vunpack.c.l.b16 %v948
        %v1113 = vunpack.c.h.b16 %v948
        %v1114 = vpack.c.b16 %v1020, %v1018
        %v1115 = vpack.c.b16 %v1021, %v1019
        %v1116 = vpack.c.b16 %v1024, %v1022
        %v1117 = vpack.c.b16 %v1025, %v1023
        %v1118 = vpack.c.b16 %v1028, %v1026
        %v1119 = vpack.c.b16 %v1029, %v1027
        %v1120 = vpack.c.b16 %v1032, %v1030
        %v1121 = vpack.c.b16 %v1033, %v1031
        %v1122 = vpack.c.b16 %v1036, %v1034
        %v1123 = vpack.c.b16 %v1037, %v1035
        %v1124 = vpack.c.b16 %v1040, %v1038
        %v1125 = vpack.c.b16 %v1041, %v1039
        %v1126 = vpack.c.b16 %v1044, %v1042
        %v1127 = vpack.c.b16 %v1045, %v1043
        %v1128 = vpack.c.b16 %v1048, %v1046
        %v1129 = vpack.c.b16 %v1049, %v1047
        %v1130 = vpack.c.b16 %v1052, %v1050
        %v1131 = vpack.c.b16 %v1053, %v1051
        %v1132 = vpack.c.b16 %v1056, %v1054
        %v1133 = vpack.c.b16 %v1057, %v1055
        %v1134 = vpack.c.b16 %v1060, %v1058
        %v1135 = vpack.c.b16 %v1061, %v1059
        %v1136 = vpack.c.b16 %v1064, %v1062
        %v1137 = vpack.c.b16 %v1065, %v1063
        %v1138 = vpack.c.b16 %v1068, %v1066
        %v1139 = vpack.c.b16 %v1069, %v1067
        %v1140 = vpack.c.b16 %v1072, %v1070
        %v1141 = vpack.c.b16 %v1073, %v1071
        %v1142 = vpack.c.b16 %v1076, %v1074
        %v1143 = vpack.c.b16 %v1077, %v1075
        %v1144 = vpack.c.b16 %v1080, %v1078
        %v1145 = vpack.c.b16 %v1081, %v1079
        %v1146 = vpack.c.b16 %v1084, %v1082
        %v1147 = vpack.c.b16 %v1085, %v1083
        %v1148 = vpack.c.b16 %v1088, %v1086
        %v1149 = vpack.c.b16 %v1089, %v1087
        %v1150 = vpack.c.b16 %v1092, %v1090
        %v1151 = vpack.c.b16 %v1093, %v1091
        %v1152 = vpack.c.b16 %v1096, %v1094
        %v1153 = vpack.c.b16 %v1097, %v1095
        %v1154 = vpack.c.b16 %v1100, %v1098
        %v1155 = vpack.c.b16 %v1101, %v1099
        %v1156 = vpack.c.b16 %v1104, %v1102
        %v1157 = vpack.c.b16 %v1105, %v1103
        %v1158 = vpack.c.b16 %v1108, %v1106
        %v1159 = vpack.c.b16 %v1109, %v1107
        %v1160 = vpack.c.b16 %v1112, %v1110
        %v1161 = vpack.c.b16 %v1113, %v1111
        %1210 = vmatprep.subr.bf16.mxu0 %v1115
        %1211 = vmatpush1.bf16.msra.mxu0 %v1114
        %1212 = vmatprep.subr.bf16.mxu0 %v1117
        %1213 = vmatpush1.bf16.msra.mxu0 %v1116
        %1214 = vmatprep.subr.bf16.mxu0 %v1119
        %1215 = vmatpush1.bf16.msra.mxu0 %v1118
        %1216 = vmatprep.subr.bf16.mxu0 %v1121
        %1217 = vmatpush1.bf16.msra.mxu0 %v1120
        %1218 = vmatprep.subr.bf16.mxu0 %v1123
        %1219 = vmatpush1.bf16.msra.mxu0 %v1122
        %1220 = vmatprep.subr.bf16.mxu0 %v1125
        %1221 = vmatpush1.bf16.msra.mxu0 %v1124
        %1222 = vmatprep.subr.bf16.mxu0 %v1127
        %1223 = vmatpush1.bf16.msra.mxu0 %v1126
        %1224 = vmatprep.subr.bf16.mxu0 %v1129
        %1225 = vmatpush1.bf16.msra.mxu0 %v1128
        %1226 = vmatprep.subr.bf16.mxu0 %v1131
        %1227 = vmatpush1.bf16.msra.mxu0 %v1130
        %1228 = vmatprep.subr.bf16.mxu0 %v1133
        %1229 = vmatpush1.bf16.msra.mxu0 %v1132
        %1230 = vmatprep.subr.bf16.mxu0 %v1135
        %1231 = vmatpush1.bf16.msra.mxu0 %v1134
        %1232 = vmatprep.subr.bf16.mxu0 %v1137
        %1233 = vmatpush1.bf16.msra.mxu0 %v1136
        %1234 = vmatprep.subr.bf16.mxu0 %v1139
        %1235 = vmatpush1.bf16.msra.mxu0 %v1138
        %1236 = vmatprep.subr.bf16.mxu0 %v1141
        %1237 = vmatpush1.bf16.msra.mxu0 %v1140
        %1238 = vmatprep.subr.bf16.mxu0 %v1143
        %1239 = vmatpush1.bf16.msra.mxu0 %v1142
        %1240 = vmatprep.subr.bf16.mxu0 %v1145
        %1241 = vmatpush1.bf16.msra.mxu0 %v1144
        %1242 = vmatprep.mubr.bf16.mxu0 %v965
        %1243 = vmatmul.mubr.bf16.gmra.mrb[0].mxu0 %v964
        %v1244 = vpop.f32.mrb[0].mxu0
        %v1245 = vadd.f32 %v954, %v1244
        %v1246 = vpop.f32.mrb[0].mxu0
        %v1247 = vadd.f32 %v958, %v1246
        %v1248 = vpop.f32.mrb[0].mxu0
        %v1249 = vpop.f32.mrb[0].mxu0
        %1250 = vdwg.mxu0
        %1251 = vmatprep.subr.bf16.mxu0 %v1147
        %1252 = vmatpush1.bf16.msra.mxu0 %v1146
        %1253 = vmatprep.subr.bf16.mxu0 %v1149
        %1254 = vmatpush1.bf16.msra.mxu0 %v1148
        %1255 = vmatprep.subr.bf16.mxu0 %v1151
        %1256 = vmatpush1.bf16.msra.mxu0 %v1150
        %1257 = vmatprep.subr.bf16.mxu0 %v1153
        %1258 = vmatpush1.bf16.msra.mxu0 %v1152
        %1259 = vmatprep.subr.bf16.mxu0 %v1155
        %1260 = vmatpush1.bf16.msra.mxu0 %v1154
        %1261 = vmatprep.subr.bf16.mxu0 %v1157
        %1262 = vmatpush1.bf16.msra.mxu0 %v1156
        %1263 = vmatprep.subr.bf16.mxu0 %v1159
        %1264 = vmatpush1.bf16.msra.mxu0 %v1158
        %1265 = vmatprep.subr.bf16.mxu0 %v1161
        %1266 = vmatpush1.bf16.msra.mxu0 %v1160
        %1267 = vmatprep.subr.bf16.mxu0 0
        %1268 = vmatpush1.bf16.msra.mxu0 0
        %1269 = vmatprep.subr.bf16.mxu0 0
        %1270 = vmatpush1.bf16.msra.mxu0 0
        %1271 = vmatprep.subr.bf16.mxu0 0
        %1272 = vmatpush1.bf16.msra.mxu0 0
        %1273 = vmatprep.subr.bf16.mxu0 0
        %1274 = vmatpush1.bf16.msra.mxu0 0
        %1275 = vmatprep.subr.bf16.mxu0 0
        %1276 = vmatpush1.bf16.msra.mxu0 0
        %1277 = vmatprep.subr.bf16.mxu0 0
        %1278 = vmatpush1.bf16.msra.mxu0 0
        %1279 = vmatprep.subr.bf16.mxu0 0
        %1280 = vmatpush1.bf16.msra.mxu0 0
        %1281 = vmatprep.subr.bf16.mxu0 0
        %1282 = vmatpush1.bf16.msra.mxu0 0
        %1283 = vmatprep.mubr.bf16.mxu0 0
        %1284 = vmatmul.mubr.bf16.gmra.mrb[0].mxu0 %v966
        %v1285 = vpop.f32.mrb[0].mxu0
        %v1286 = vadd.f32 %v1245, %v1285
        %v1287 = vpop.f32.mrb[0].mxu0
        %v1288 = vadd.f32 %v1247, %v1287
        %v1289 = vpop.f32.mrb[0].mxu0
        %v1290 = vpop.f32.mrb[0].mxu0
        %1291 = vdwg.mxu0
        %v1292 = vxor.u32 %v1288, 2147483648
        %v1293 = vmul.f32 %v1292, 1.442695
        %v1294 = vpow.pop %v1293
        %v1295 = vadd.f32 %v1294, 1.0
        %v1296 = vrcp.pop %v1295
        %v1297 = vmul.f32 1.0, %v1296
        %v1298 = vmul.f32 %v1286, %v1297
        %v1299 = vpack.c.bf16 %v1298, %v1298
        %v1300 = vld [vmem:[#allocation12] sm:$0xf]
        %v1301 = vld [vmem:[#allocation12 + $0x4] sm:$0xf]
        %v1302 = vld [vmem:[#allocation12 + $0x8] sm:$0xf]
        %v1303 = vld [vmem:[#allocation12 + $0xc] sm:$0xf]
        %v1304 = vld [vmem:[#allocation12 + $0x10] sm:$0xf]
        %v1305 = vld [vmem:[#allocation12 + $0x14] sm:$0xf]
        %v1306 = vld [vmem:[#allocation12 + $0x18] sm:$0xf]
        %v1307 = vld [vmem:[#allocation12 + $0x1c] sm:$0xf]
        %v1308 = vld [vmem:[#allocation12 + $0x20] sm:$0xf]
        %v1309 = vld [vmem:[#allocation12 + $0x24] sm:$0xf]
        %v1310 = vld [vmem:[#allocation12 + $0x28] sm:$0xf]
        %v1311 = vld [vmem:[#allocation12 + $0x2c] sm:$0xf]
        %v1312 = vld [vmem:[#allocation12 + $0x30] sm:$0xf]
        %v1313 = vld [vmem:[#allocation12 + $0x34] sm:$0xf]
        %v1314 = vld [vmem:[#allocation12 + $0x38] sm:$0xf]
        %v1315 = vld [vmem:[#allocation12 + $0x3c] sm:$0xf]
        %v1316 = vld [vmem:[%s8] sm:$0x1]
        %v1318 = vlaneseq
        %v1319 = vshrl.u32 %v1318, 7
        %v1320 = vsub.s32 0, %v1319
        %v1321 = vrot.slane %v1316, %v1320
        %v1339 = vunpack.c.l.b16 %v1300
        %v1340 = vunpack.c.l.b16 %v1301
        %v1341 = vunpack.c.l.b16 %v1302
        %v1342 = vunpack.c.l.b16 %v1303
        %v1343 = vunpack.c.l.b16 %v1304
        %v1344 = vunpack.c.l.b16 %v1305
        %v1345 = vunpack.c.l.b16 %v1306
        %v1346 = vunpack.c.l.b16 %v1307
        %v1347 = vunpack.c.l.b16 %v1308
        %v1348 = vunpack.c.l.b16 %v1309
        %v1349 = vunpack.c.l.b16 %v1310
        %v1350 = vunpack.c.l.b16 %v1311
        %v1351 = vunpack.c.l.b16 %v1312
        %v1352 = vunpack.c.l.b16 %v1313
        %v1353 = vunpack.c.l.b16 %v1314
        %v1354 = vunpack.c.l.b16 %v1315
        %v1355 = vpack.c.b16 %v1340, %v1339
        %v1356 = vpack.c.b16 %v1342, %v1341
        %v1357 = vpack.c.b16 %v1344, %v1343
        %v1358 = vpack.c.b16 %v1346, %v1345
        %v1359 = vpack.c.b16 %v1348, %v1347
        %v1360 = vpack.c.b16 %v1350, %v1349
        %v1361 = vpack.c.b16 %v1352, %v1351
        %v1362 = vpack.c.b16 %v1354, %v1353
        %1371 = vmatprep.subr.bf16.mxu0 0
        %1372 = vmatpush1.bf16.msra.mxu0 %v1355
        %1373 = vmatprep.subr.bf16.mxu0 0
        %1374 = vmatpush1.bf16.msra.mxu0 %v1356
        %1375 = vmatprep.subr.bf16.mxu0 0
        %1376 = vmatpush1.bf16.msra.mxu0 %v1357
        %1377 = vmatprep.subr.bf16.mxu0 0
        %1378 = vmatpush1.bf16.msra.mxu0 %v1358
        %1379 = vmatprep.subr.bf16.mxu0 0
        %1380 = vmatpush1.bf16.msra.mxu0 %v1359
        %1381 = vmatprep.subr.bf16.mxu0 0
        %1382 = vmatpush1.bf16.msra.mxu0 %v1360
        %1383 = vmatprep.subr.bf16.mxu0 0
        %1384 = vmatpush1.bf16.msra.mxu0 %v1361
        %1385 = vmatprep.subr.bf16.mxu0 0
        %1386 = vmatpush1.bf16.msra.mxu0 %v1362
        %1387 = vmatprep.subr.bf16.mxu0 0
        %1388 = vmatpush1.bf16.msra.mxu0 0
        %1389 = vmatprep.subr.bf16.mxu0 0
        %1390 = vmatpush1.bf16.msra.mxu0 0
        %1391 = vmatprep.subr.bf16.mxu0 0
        %1392 = vmatpush1.bf16.msra.mxu0 0
        %1393 = vmatprep.subr.bf16.mxu0 0
        %1394 = vmatpush1.bf16.msra.mxu0 0
        %1395 = vmatprep.subr.bf16.mxu0 0
        %1396 = vmatpush1.bf16.msra.mxu0 0
        %1397 = vmatprep.subr.bf16.mxu0 0
        %1398 = vmatpush1.bf16.msra.mxu0 0
        %1399 = vmatprep.subr.bf16.mxu0 0
        %1400 = vmatpush1.bf16.msra.mxu0 0
        %1401 = vmatprep.subr.bf16.mxu0 0
        %1402 = vmatpush1.bf16.msra.mxu0 0
        %1403 = vmatprep.mubr.bf16.mxu0 0
        %1404 = vmatmul.mubr.bf16.gmra.mrb[0].mxu0 %v1299
        %v1405 = vpop.f32.mrb[0].mxu0
        %v1406 = vadd.f32 %v1321, %v1405
        %v1407 = vpop.f32.mrb[0].mxu0
        %v1408 = vpop.f32.mrb[0].mxu0
        %v1409 = vpop.f32.mrb[0].mxu0
        %1410 = vdwg.mxu0
        %v1411 = vadd.f32 %v1406, %v767
        %v1412 = vmul.f32 %v1411, 0.70710677
        %v1413 = vpack.c.bf16 %v1412, %v1412
        %v1414 = vld [vmem:[%s651] sm:$0xf]
        %v1415 = vld [vmem:[%s651 + $0x4] sm:$0xf]
        %v1416 = vld [vmem:[%s651 + $0x8] sm:$0xf]
        %v1417 = vld [vmem:[%s651 + $0xc] sm:$0xf]
        %v1418 = vld [vmem:[%s651 + $0x10] sm:$0xf]
        %v1419 = vld [vmem:[%s651 + $0x14] sm:$0xf]
        %v1420 = vld [vmem:[%s651 + $0x18] sm:$0xf]
        %v1421 = vld [vmem:[%s651 + $0x1c] sm:$0xf]
        %v1422 = vld [vmem:[%s651 + $0x20] sm:$0xf]
        %v1423 = vld [vmem:[%s651 + $0x24] sm:$0xf]
        %v1424 = vld [vmem:[%s651 + $0x28] sm:$0xf]
        %v1425 = vld [vmem:[%s651 + $0x2c] sm:$0xf]
        %v1426 = vld [vmem:[%s651 + $0x30] sm:$0xf]
        %v1427 = vld [vmem:[%s651 + $0x34] sm:$0xf]
        %v1428 = vld [vmem:[%s651 + $0x38] sm:$0xf]
        %v1429 = vld [vmem:[%s651 + $0x3c] sm:$0xf]
        %v1446 = vunpack.c.l.b16 %v1414
        %v1447 = vunpack.c.l.b16 %v1415
        %v1448 = vunpack.c.l.b16 %v1416
        %v1449 = vunpack.c.l.b16 %v1417
        %v1450 = vunpack.c.l.b16 %v1418
        %v1451 = vunpack.c.l.b16 %v1419
        %v1452 = vunpack.c.l.b16 %v1420
        %v1453 = vunpack.c.l.b16 %v1421
        %v1454 = vunpack.c.l.b16 %v1422
        %v1455 = vunpack.c.l.b16 %v1423
        %v1456 = vunpack.c.l.b16 %v1424
        %v1457 = vunpack.c.l.b16 %v1425
        %v1458 = vunpack.c.l.b16 %v1426
        %v1459 = vunpack.c.l.b16 %v1427
        %v1460 = vunpack.c.l.b16 %v1428
        %v1461 = vunpack.c.l.b16 %v1429
        %v1462 = vpack.c.b16 %v1447, %v1446
        %v1463 = vpack.c.b16 %v1449, %v1448
        %v1464 = vpack.c.b16 %v1451, %v1450
        %v1465 = vpack.c.b16 %v1453, %v1452
        %v1466 = vpack.c.b16 %v1455, %v1454
        %v1467 = vpack.c.b16 %v1457, %v1456
        %v1468 = vpack.c.b16 %v1459, %v1458
        %v1469 = vpack.c.b16 %v1461, %v1460
        %1478 = vmatprep.subr.bf16.mxu0 0
        %1479 = vmatpush1.bf16.msra.mxu0 %v1462
        %1480 = vmatprep.subr.bf16.mxu0 0
        %1481 = vmatpush1.bf16.msra.mxu0 %v1463
        %1482 = vmatprep.subr.bf16.mxu0 0
        %1483 = vmatpush1.bf16.msra.mxu0 %v1464
        %1484 = vmatprep.subr.bf16.mxu0 0
        %1485 = vmatpush1.bf16.msra.mxu0 %v1465
        %1486 = vmatprep.subr.bf16.mxu0 0
        %1487 = vmatpush1.bf16.msra.mxu0 %v1466
        %1488 = vmatprep.subr.bf16.mxu0 0
        %1489 = vmatpush1.bf16.msra.mxu0 %v1467
        %1490 = vmatprep.subr.bf16.mxu0 0
        %1491 = vmatpush1.bf16.msra.mxu0 %v1468
        %1492 = vmatprep.subr.bf16.mxu0 0
        %1493 = vmatpush1.bf16.msra.mxu0 %v1469
        %1494 = vmatprep.subr.bf16.mxu0 0
        %1495 = vmatpush1.bf16.msra.mxu0 0
        %1496 = vmatprep.subr.bf16.mxu0 0
        %1497 = vmatpush1.bf16.msra.mxu0 0
        %1498 = vmatprep.subr.bf16.mxu0 0
        %1499 = vmatpush1.bf16.msra.mxu0 0
        %1500 = vmatprep.subr.bf16.mxu0 0
        %1501 = vmatpush1.bf16.msra.mxu0 0
        %1502 = vmatprep.subr.bf16.mxu0 0
        %1503 = vmatpush1.bf16.msra.mxu0 0
        %1504 = vmatprep.subr.bf16.mxu0 0
        %1505 = vmatpush1.bf16.msra.mxu0 0
        %1506 = vmatprep.subr.bf16.mxu0 0
        %1507 = vmatpush1.bf16.msra.mxu0 0
        %1508 = vmatprep.subr.bf16.mxu0 0
        %1509 = vmatpush1.bf16.msra.mxu0 0
        %1510 = vmatprep.mubr.bf16.mxu0 0
        %1511 = vmatmul.mubr.bf16.gmra.mrb[0].mxu0 %v1413
        %v1512 = vpop.f32.mrb[0].mxu0
        %v1513 = vadd.f32 0.0, %v1512
        %v1514 = vpop.f32.mrb[0].mxu0
        %v1515 = vpop.f32.mrb[0].mxu0
        %v1516 = vpop.f32.mrb[0].mxu0
        %1517 = vdwg.mxu0
        %v1518 = vlaneseq
        %v1519 = vand.u32 %v1518, 127
        %vm1520 = vcmp.lt.s32.totalorder %v1519, 12
        %v1521 = vsel %vm1520, %v1513, -1e+30
        %1522 = vmax.xlane.f32.xlu0 %v1521
        %v1523 = vpop.xlane.xlu0 %1522
        %v1524 = vsub.f32 %v1521, %v1523
        %v1525 = vmul.f32 %v1524, 1.442695
        %v1526 = vpow.pop %v1525
        %1527 = vadd.xlane.f32.xlu0 %v1526
        %v1528 = vpop.xlane.xlu0 %1527
        %v1529 = vrcp.pop %v1528
        %v1530 = vmul.f32 %v1526, %v1529
        %v1531 = vpack.c.bf16 %v1530, %v1530
        %v1532 = vld [vmem:[%s660] sm:$0xf]
        %v1533 = vld [vmem:[%s660 + $0x4] sm:$0xf]
        %v1534 = vld [vmem:[%s660 + $0x8] sm:$0xf]
        %v1535 = vld [vmem:[%s660 + $0xc] sm:$0xf]
        %v1536 = vld [vmem:[%s660 + $0x10] sm:$0xf]
        %v1537 = vld [vmem:[%s660 + $0x14] sm:$0xf]
        %v1538 = vld [vmem:[%s660 + $0x18] sm:$0xf]
        %v1539 = vld [vmem:[%s660 + $0x1c] sm:$0xf]
        %v1540 = vld [vmem:[%s660 + $0x20] sm:$0xf]
        %v1541 = vld [vmem:[%s660 + $0x24] sm:$0xf]
        %v1542 = vld [vmem:[%s660 + $0x28] sm:$0xf]
        %v1543 = vld [vmem:[%s660 + $0x2c] sm:$0xf]
        %v1544 = vld [vmem:[%s660 + $0x30] sm:$0xf]
        %v1545 = vld [vmem:[%s660 + $0x34] sm:$0xf]
        %v1546 = vld [vmem:[%s660 + $0x38] sm:$0xf]
        %v1547 = vld [vmem:[%s660 + $0x3c] sm:$0xf]
        %v1564 = vunpack.c.l.b16 %v1532
        %v1565 = vunpack.c.l.b16 %v1533
        %v1566 = vunpack.c.l.b16 %v1534
        %v1567 = vunpack.c.l.b16 %v1535
        %v1568 = vunpack.c.l.b16 %v1536
        %v1569 = vunpack.c.l.b16 %v1537
        %v1570 = vunpack.c.l.b16 %v1538
        %v1571 = vunpack.c.l.b16 %v1539
        %v1572 = vunpack.c.l.b16 %v1540
        %v1573 = vunpack.c.l.b16 %v1541
        %v1574 = vunpack.c.l.b16 %v1542
        %v1575 = vunpack.c.l.b16 %v1543
        %v1576 = vunpack.c.l.b16 %v1544
        %v1577 = vunpack.c.l.b16 %v1545
        %v1578 = vunpack.c.l.b16 %v1546
        %v1579 = vunpack.c.l.b16 %v1547
        %v1580 = vpack.c.b16 %v1565, %v1564
        %v1581 = vpack.c.b16 %v1567, %v1566
        %v1582 = vpack.c.b16 %v1569, %v1568
        %v1583 = vpack.c.b16 %v1571, %v1570
        %v1584 = vpack.c.b16 %v1573, %v1572
        %v1585 = vpack.c.b16 %v1575, %v1574
        %v1586 = vpack.c.b16 %v1577, %v1576
        %v1587 = vpack.c.b16 %v1579, %v1578
        %1596 = vmatprep.subr.bf16.mxu0 0
        %1597 = vmatpush1.bf16.msra.mxu0 %v1580
        %1598 = vmatprep.subr.bf16.mxu0 0
        %1599 = vmatpush1.bf16.msra.mxu0 %v1581
        %1600 = vmatprep.subr.bf16.mxu0 0
        %1601 = vmatpush1.bf16.msra.mxu0 %v1582
        %1602 = vmatprep.subr.bf16.mxu0 0
        %1603 = vmatpush1.bf16.msra.mxu0 %v1583
        %1604 = vmatprep.subr.bf16.mxu0 0
        %1605 = vmatpush1.bf16.msra.mxu0 %v1584
        %1606 = vmatprep.subr.bf16.mxu0 0
        %1607 = vmatpush1.bf16.msra.mxu0 %v1585
        %1608 = vmatprep.subr.bf16.mxu0 0
        %1609 = vmatpush1.bf16.msra.mxu0 %v1586
        %1610 = vmatprep.subr.bf16.mxu0 0
        %1611 = vmatpush1.bf16.msra.mxu0 %v1587
        %1612 = vmatprep.subr.bf16.mxu0 0
        %1613 = vmatpush1.bf16.msra.mxu0 0
        %1614 = vmatprep.subr.bf16.mxu0 0
        %1615 = vmatpush1.bf16.msra.mxu0 0
        %1616 = vmatprep.subr.bf16.mxu0 0
        %1617 = vmatpush1.bf16.msra.mxu0 0
        %1618 = vmatprep.subr.bf16.mxu0 0
        %1619 = vmatpush1.bf16.msra.mxu0 0
        %1620 = vmatprep.subr.bf16.mxu0 0
        %1621 = vmatpush1.bf16.msra.mxu0 0
        %1622 = vmatprep.subr.bf16.mxu0 0
        %1623 = vmatpush1.bf16.msra.mxu0 0
        %1624 = vmatprep.subr.bf16.mxu0 0
        %1625 = vmatpush1.bf16.msra.mxu0 0
        %1626 = vmatprep.subr.bf16.mxu0 0
        %1627 = vmatpush1.bf16.msra.mxu0 0
        %1628 = vmatprep.mubr.bf16.mxu0 0
        %1629 = vmatmul.mubr.bf16.gmra.mrb[0].mxu0 %v1531
        %v1630 = vpop.f32.mrb[0].mxu0
        %v1631 = vadd.f32 0.0, %v1630
        %v1632 = vpop.f32.mrb[0].mxu0
        %v1633 = vpop.f32.mrb[0].mxu0
        %v1634 = vpop.f32.mrb[0].mxu0
        %1635 = vdwg.mxu0
        %v1636 = vpack.c.bf16 %v1631, %v1631
        %v1637 = vld [vmem:[#allocation14] sm:$0xf]
        %v1638 = vld [vmem:[#allocation14 + $0x4] sm:$0xf]
        %v1639 = vld [vmem:[#allocation14 + $0x8] sm:$0xf]
        %v1640 = vld [vmem:[#allocation14 + $0xc] sm:$0xf]
        %v1641 = vld [vmem:[#allocation14 + $0x10] sm:$0xf]
        %v1642 = vld [vmem:[#allocation14 + $0x14] sm:$0xf]
        %v1643 = vld [vmem:[#allocation14 + $0x18] sm:$0xf]
        %v1644 = vld [vmem:[#allocation14 + $0x1c] sm:$0xf]
        %v1645 = vld [vmem:[#allocation14 + $0x20] sm:$0xf]
        %v1646 = vld [vmem:[#allocation14 + $0x24] sm:$0xf]
        %v1647 = vld [vmem:[#allocation14 + $0x28] sm:$0xf]
        %v1648 = vld [vmem:[#allocation14 + $0x2c] sm:$0xf]
        %v1649 = vld [vmem:[#allocation14 + $0x30] sm:$0xf]
        %v1650 = vld [vmem:[#allocation14 + $0x34] sm:$0xf]
        %v1651 = vld [vmem:[#allocation14 + $0x38] sm:$0xf]
        %v1652 = vld [vmem:[#allocation14 + $0x3c] sm:$0xf]
        %v1653 = vld [vmem:[%s10] sm:$0x1]
        %v1655 = vlaneseq
        %v1656 = vshrl.u32 %v1655, 7
        %v1657 = vsub.s32 0, %v1656
        %v1658 = vrot.slane %v1653, %v1657
        %v1676 = vunpack.c.l.b16 %v1637
        %v1677 = vunpack.c.l.b16 %v1638
        %v1678 = vunpack.c.l.b16 %v1639
        %v1679 = vunpack.c.l.b16 %v1640
        %v1680 = vunpack.c.l.b16 %v1641
        %v1681 = vunpack.c.l.b16 %v1642
        %v1682 = vunpack.c.l.b16 %v1643
        %v1683 = vunpack.c.l.b16 %v1644
        %v1684 = vunpack.c.l.b16 %v1645
        %v1685 = vunpack.c.l.b16 %v1646
        %v1686 = vunpack.c.l.b16 %v1647
        %v1687 = vunpack.c.l.b16 %v1648
        %v1688 = vunpack.c.l.b16 %v1649
        %v1689 = vunpack.c.l.b16 %v1650
        %v1690 = vunpack.c.l.b16 %v1651
        %v1691 = vunpack.c.l.b16 %v1652
        %v1692 = vpack.c.b16 %v1677, %v1676
        %v1693 = vpack.c.b16 %v1679, %v1678
        %v1694 = vpack.c.b16 %v1681, %v1680
        %v1695 = vpack.c.b16 %v1683, %v1682
        %v1696 = vpack.c.b16 %v1685, %v1684
        %v1697 = vpack.c.b16 %v1687, %v1686
        %v1698 = vpack.c.b16 %v1689, %v1688
        %v1699 = vpack.c.b16 %v1691, %v1690
        %1708 = vmatprep.subr.bf16.mxu0 0
        %1709 = vmatpush1.bf16.msra.mxu0 %v1692
        %1710 = vmatprep.subr.bf16.mxu0 0
        %1711 = vmatpush1.bf16.msra.mxu0 %v1693
        %1712 = vmatprep.subr.bf16.mxu0 0
        %1713 = vmatpush1.bf16.msra.mxu0 %v1694
        %1714 = vmatprep.subr.bf16.mxu0 0
        %1715 = vmatpush1.bf16.msra.mxu0 %v1695
        %1716 = vmatprep.subr.bf16.mxu0 0
        %1717 = vmatpush1.bf16.msra.mxu0 %v1696
        %1718 = vmatprep.subr.bf16.mxu0 0
        %1719 = vmatpush1.bf16.msra.mxu0 %v1697
        %1720 = vmatprep.subr.bf16.mxu0 0
        %1721 = vmatpush1.bf16.msra.mxu0 %v1698
        %1722 = vmatprep.subr.bf16.mxu0 0
        %1723 = vmatpush1.bf16.msra.mxu0 %v1699
        %1724 = vmatprep.subr.bf16.mxu0 0
        %1725 = vmatpush1.bf16.msra.mxu0 0
        %1726 = vmatprep.subr.bf16.mxu0 0
        %1727 = vmatpush1.bf16.msra.mxu0 0
        %1728 = vmatprep.subr.bf16.mxu0 0
        %1729 = vmatpush1.bf16.msra.mxu0 0
        %1730 = vmatprep.subr.bf16.mxu0 0
        %1731 = vmatpush1.bf16.msra.mxu0 0
        %1732 = vmatprep.subr.bf16.mxu0 0
        %1733 = vmatpush1.bf16.msra.mxu0 0
        %1734 = vmatprep.subr.bf16.mxu0 0
        %1735 = vmatpush1.bf16.msra.mxu0 0
        %1736 = vmatprep.subr.bf16.mxu0 0
        %1737 = vmatpush1.bf16.msra.mxu0 0
        %1738 = vmatprep.subr.bf16.mxu0 0
        %1739 = vmatpush1.bf16.msra.mxu0 0
        %1740 = vmatprep.mubr.bf16.mxu0 0
        %1741 = vmatmul.mubr.bf16.gmra.mrb[0].mxu0 %v1636
        %v1742 = vpop.f32.mrb[0].mxu0
        %v1743 = vadd.f32 %v1658, %v1742
        %v1744 = vpop.f32.mrb[0].mxu0
        %v1745 = vpop.f32.mrb[0].mxu0
        %v1746 = vpop.f32.mrb[0].mxu0
        %1747 = vdwg.mxu0
        %v1748 = vadd.f32 %v1298, %v1743
        %v1749 = vmul.f32 %v1748, 0.70710677
        %v1750 = vadd.f32 %v1749, %v887
        %v1751 = vmul.f32 %v1750, 0.70710677
        %1752 = vst [vmem:[#allocation2 + $0x8] sm:$0xff] %v1751
        %p1753 = scmp.eq.s32.totalorder %s50, 1
        // Predicated region
        $region121: #{tpu_custom_call.1} parent=79 // pred_check
          %p1754 = pneg %p1753
        $region122: #{tpu_custom_call.1} parent=79 // pred_check_branch
          %1756 = sbr.rel (%p1754) target = $region124
        $region123: #{tpu_custom_call.1} parent=79 // pred_region
          %v1757 = vpack.c.bf16 %v1751, %v1751
          %v1758 = vld [vmem:[#allocation15] sm:$0xf]
          %v1759 = vld [vmem:[#allocation15 + $0x4] sm:$0xf]
          %v1760 = vld [vmem:[#allocation15 + $0x8] sm:$0xf]
          %v1761 = vld [vmem:[#allocation15 + $0xc] sm:$0xf]
          %v1762 = vld [vmem:[#allocation15 + $0x10] sm:$0xf]
          %v1763 = vld [vmem:[#allocation15 + $0x14] sm:$0xf]
          %v1764 = vld [vmem:[#allocation15 + $0x18] sm:$0xf]
          %v1765 = vld [vmem:[#allocation15 + $0x1c] sm:$0xf]
          %v1766 = vld [vmem:[#allocation15 + $0x20] sm:$0xf]
          %v1767 = vld [vmem:[#allocation15 + $0x24] sm:$0xf]
          %v1768 = vld [vmem:[#allocation15 + $0x28] sm:$0xf]
          %v1769 = vld [vmem:[#allocation15 + $0x2c] sm:$0xf]
          %v1770 = vld [vmem:[#allocation15 + $0x30] sm:$0xf]
          %v1771 = vld [vmem:[#allocation15 + $0x34] sm:$0xf]
          %v1772 = vld [vmem:[#allocation15 + $0x38] sm:$0xf]
          %v1773 = vld [vmem:[#allocation15 + $0x3c] sm:$0xf]
          %v1774 = vld [vmem:[%s12] sm:$0x1]
          %v1776 = vlaneseq
          %v1777 = vshrl.u32 %v1776, 7
          %v1778 = vsub.s32 0, %v1777
          %v1779 = vrot.slane %v1774, %v1778
          %v1797 = vunpack.c.l.b16 %v1758
          %v1798 = vunpack.c.l.b16 %v1759
          %v1799 = vunpack.c.l.b16 %v1760
          %v1800 = vunpack.c.l.b16 %v1761
          %v1801 = vunpack.c.l.b16 %v1762
          %v1802 = vunpack.c.l.b16 %v1763
          %v1803 = vunpack.c.l.b16 %v1764
          %v1804 = vunpack.c.l.b16 %v1765
          %v1805 = vunpack.c.l.b16 %v1766
          %v1806 = vunpack.c.l.b16 %v1767
          %v1807 = vunpack.c.l.b16 %v1768
          %v1808 = vunpack.c.l.b16 %v1769
          %v1809 = vunpack.c.l.b16 %v1770
          %v1810 = vunpack.c.l.b16 %v1771
          %v1811 = vunpack.c.l.b16 %v1772
          %v1812 = vunpack.c.l.b16 %v1773
          %v1813 = vpack.c.b16 %v1798, %v1797
          %v1814 = vpack.c.b16 %v1800, %v1799
          %v1815 = vpack.c.b16 %v1802, %v1801
          %v1816 = vpack.c.b16 %v1804, %v1803
          %v1817 = vpack.c.b16 %v1806, %v1805
          %v1818 = vpack.c.b16 %v1808, %v1807
          %v1819 = vpack.c.b16 %v1810, %v1809
          %v1820 = vpack.c.b16 %v1812, %v1811
          %1829 = vmatprep.subr.bf16.mxu0 0
          %1830 = vmatpush1.bf16.msra.mxu0 %v1813
          %1831 = vmatprep.subr.bf16.mxu0 0
          %1832 = vmatpush1.bf16.msra.mxu0 %v1814
          %1833 = vmatprep.subr.bf16.mxu0 0
          %1834 = vmatpush1.bf16.msra.mxu0 %v1815
          %1835 = vmatprep.subr.bf16.mxu0 0
          %1836 = vmatpush1.bf16.msra.mxu0 %v1816
          %1837 = vmatprep.subr.bf16.mxu0 0
          %1838 = vmatpush1.bf16.msra.mxu0 %v1817
          %1839 = vmatprep.subr.bf16.mxu0 0
          %1840 = vmatpush1.bf16.msra.mxu0 %v1818
          %1841 = vmatprep.subr.bf16.mxu0 0
          %1842 = vmatpush1.bf16.msra.mxu0 %v1819
          %1843 = vmatprep.subr.bf16.mxu0 0
          %1844 = vmatpush1.bf16.msra.mxu0 %v1820
          %1845 = vmatprep.subr.bf16.mxu0 0
          %1846 = vmatpush1.bf16.msra.mxu0 0
          %1847 = vmatprep.subr.bf16.mxu0 0
          %1848 = vmatpush1.bf16.msra.mxu0 0
          %1849 = vmatprep.subr.bf16.mxu0 0
          %1850 = vmatpush1.bf16.msra.mxu0 0
          %1851 = vmatprep.subr.bf16.mxu0 0
          %1852 = vmatpush1.bf16.msra.mxu0 0
          %1853 = vmatprep.subr.bf16.mxu0 0
          %1854 = vmatpush1.bf16.msra.mxu0 0
          %1855 = vmatprep.subr.bf16.mxu0 0
          %1856 = vmatpush1.bf16.msra.mxu0 0
          %1857 = vmatprep.subr.bf16.mxu0 0
          %1858 = vmatpush1.bf16.msra.mxu0 0
          %1859 = vmatprep.subr.bf16.mxu0 0
          %1860 = vmatpush1.bf16.msra.mxu0 0
          %1861 = vmatprep.mubr.bf16.mxu0 0
          %1862 = vmatmul.mubr.bf16.gmra.mrb[0].mxu0 %v1757
          %v1863 = vpop.f32.mrb[0].mxu0
          %v1864 = vadd.f32 %v1779, %v1863
          %v1865 = vpop.f32.mrb[0].mxu0
          %v1866 = vpop.f32.mrb[0].mxu0
          %v1867 = vpop.f32.mrb[0].mxu0
          %1868 = vdwg.mxu0
          %v1869 = vpack.c.bf16 %v1864, %v1864
          %v1870 = vld [vmem:[#allocation17] sm:$0xf]
          %v1871 = vld [vmem:[#allocation17 + $0x4] sm:$0xf]
          %v1872 = vld [vmem:[#allocation17 + $0x8] sm:$0xf]
          %v1873 = vld [vmem:[#allocation17 + $0xc] sm:$0xf]
          %v1874 = vld [vmem:[#allocation17 + $0x10] sm:$0xf]
          %v1875 = vld [vmem:[#allocation17 + $0x14] sm:$0xf]
          %v1876 = vld [vmem:[#allocation17 + $0x18] sm:$0xf]
          %v1877 = vld [vmem:[#allocation17 + $0x1c] sm:$0xf]
          %v1878 = vld [vmem:[#allocation17 + $0x20] sm:$0xf]
          %v1879 = vld [vmem:[#allocation17 + $0x24] sm:$0xf]
          %v1880 = vld [vmem:[#allocation17 + $0x28] sm:$0xf]
          %v1881 = vld [vmem:[#allocation17 + $0x2c] sm:$0xf]
          %v1882 = vld [vmem:[#allocation17 + $0x30] sm:$0xf]
          %v1883 = vld [vmem:[#allocation17 + $0x34] sm:$0xf]
          %v1884 = vld [vmem:[#allocation17 + $0x38] sm:$0xf]
          %v1885 = vld [vmem:[#allocation17 + $0x3c] sm:$0xf]
          %v1886 = vld [vmem:[%s14] sm:$0x1]
          %v1888 = vlaneseq
          %v1889 = vshrl.u32 %v1888, 7
          %v1890 = vsub.s32 0, %v1889
          %v1891 = vrot.slane %v1886, %v1890
          %v1909 = vunpack.c.l.b16 %v1870
          %v1910 = vunpack.c.l.b16 %v1871
          %v1911 = vunpack.c.l.b16 %v1872
          %v1912 = vunpack.c.l.b16 %v1873
          %v1913 = vunpack.c.l.b16 %v1874
          %v1914 = vunpack.c.l.b16 %v1875
          %v1915 = vunpack.c.l.b16 %v1876
          %v1916 = vunpack.c.l.b16 %v1877
          %v1917 = vunpack.c.l.b16 %v1878
          %v1918 = vunpack.c.l.b16 %v1879
          %v1919 = vunpack.c.l.b16 %v1880
          %v1920 = vunpack.c.l.b16 %v1881
          %v1921 = vunpack.c.l.b16 %v1882
          %v1922 = vunpack.c.l.b16 %v1883
          %v1923 = vunpack.c.l.b16 %v1884
          %v1924 = vunpack.c.l.b16 %v1885
          %v1925 = vpack.c.b16 %v1910, %v1909
          %v1926 = vpack.c.b16 %v1912, %v1911
          %v1927 = vpack.c.b16 %v1914, %v1913
          %v1928 = vpack.c.b16 %v1916, %v1915
          %v1929 = vpack.c.b16 %v1918, %v1917
          %v1930 = vpack.c.b16 %v1920, %v1919
          %v1931 = vpack.c.b16 %v1922, %v1921
          %v1932 = vpack.c.b16 %v1924, %v1923
          %1941 = vmatprep.subr.bf16.mxu0 0
          %1942 = vmatpush1.bf16.msra.mxu0 %v1925
          %1943 = vmatprep.subr.bf16.mxu0 0
          %1944 = vmatpush1.bf16.msra.mxu0 %v1926
          %1945 = vmatprep.subr.bf16.mxu0 0
          %1946 = vmatpush1.bf16.msra.mxu0 %v1927
          %1947 = vmatprep.subr.bf16.mxu0 0
          %1948 = vmatpush1.bf16.msra.mxu0 %v1928
          %1949 = vmatprep.subr.bf16.mxu0 0
          %1950 = vmatpush1.bf16.msra.mxu0 %v1929
          %1951 = vmatprep.subr.bf16.mxu0 0
          %1952 = vmatpush1.bf16.msra.mxu0 %v1930
          %1953 = vmatprep.subr.bf16.mxu0 0
          %1954 = vmatpush1.bf16.msra.mxu0 %v1931
          %1955 = vmatprep.subr.bf16.mxu0 0
          %1956 = vmatpush1.bf16.msra.mxu0 %v1932
          %1957 = vmatprep.subr.bf16.mxu0 0
          %1958 = vmatpush1.bf16.msra.mxu0 0
          %1959 = vmatprep.subr.bf16.mxu0 0
          %1960 = vmatpush1.bf16.msra.mxu0 0
          %1961 = vmatprep.subr.bf16.mxu0 0
          %1962 = vmatpush1.bf16.msra.mxu0 0
          %1963 = vmatprep.subr.bf16.mxu0 0
          %1964 = vmatpush1.bf16.msra.mxu0 0
          %1965 = vmatprep.subr.bf16.mxu0 0
          %1966 = vmatpush1.bf16.msra.mxu0 0
          %1967 = vmatprep.subr.bf16.mxu0 0
          %1968 = vmatpush1.bf16.msra.mxu0 0
          %1969 = vmatprep.subr.bf16.mxu0 0
          %1970 = vmatpush1.bf16.msra.mxu0 0
          %1971 = vmatprep.subr.bf16.mxu0 0
          %1972 = vmatpush1.bf16.msra.mxu0 0
          %1973 = vmatprep.mubr.bf16.mxu0 0
          %1974 = vmatmul.mubr.bf16.gmra.mrb[0].mxu0 %v1869
          %v1975 = vpop.f32.mrb[0].mxu0
          %v1976 = vadd.f32 %v1891, %v1975
          %v1977 = vpop.f32.mrb[0].mxu0
          %v1978 = vpop.f32.mrb[0].mxu0
          %v1979 = vpop.f32.mrb[0].mxu0
          %1980 = vdwg.mxu0
          %1981 = vst [vmem:[%s754] sm:$0xff] %v1976
          %1982 = vst [vmem:[%s761] sm:$0xff] %v1530
        $region124: #{tpu_custom_call.1} parent=79 // pred_fallthru
          _
        %s1983 = sand.u32 %s405, 1
        %s1984 = scalar_lea.sflag [#allocation5], %s1983
        %s1985 = sand.u32 %s405, 1
        %s1986 = smul.addr %s1985, 8
        %s1987 = scalar_lea.vmem [#allocation18], %s1986
        %s1988 = sand.u32 %s431, 1
        %s1989 = scalar_lea.sflag [#allocation20], %s1988
        %s1990 = sand.u32 %s431, 1
        %s1991 = smul.addr %s1990, 8
        %s1992 = scalar_lea.vmem [#allocation19], %s1991
        // Predicated region
        $region125: #{tpu_custom_call.1} parent=79 // pred_check
          %p1993 = pneg %p415
        $region126: #{tpu_custom_call.1} parent=79 // pred_check_branch
          %1995 = sbr.rel (%p1993) target = $region128
        $region127: #{tpu_custom_call.1} parent=79 // pred_region
          %s1997 = ssub.s32 128, 128
          %1998 = vsyncadd %s1984, %s1997
          %s1999 = smul.addr %s49, 128
          %s2000 = scalar_lea.hbm %s15, %s1999
          %s2002 = sshll.u32 %s1987, 4
          %s2003 = int_to_ptr.vmem [resolvable:$true] %s2002
          %2005 = dma.vmem_to_hbm [thread:$0]  %s2003, 128, %s2000, %s1984
        $region128: #{tpu_custom_call.1} parent=79 // pred_fallthru
          _
        // Predicated region
        $region129: #{tpu_custom_call.1} parent=79 // pred_check
          %p2006 = pneg %p441
        $region130: #{tpu_custom_call.1} parent=79 // pred_check_branch
          %2008 = sbr.rel (%p2006) target = $region132
        $region131: #{tpu_custom_call.1} parent=79 // pred_region
          %s2010 = ssub.s32 128, 128
          %2011 = vsyncadd %s1989, %s2010
          %s2012 = smul.addr %s49, 128
          %s2013 = scalar_lea.hbm %s16, %s2012
          %s2015 = sshll.u32 %s1992, 4
          %s2016 = int_to_ptr.vmem [resolvable:$true] %s2015
          %2018 = dma.vmem_to_hbm [thread:$0]  %s2016, 128, %s2013, %s1989
        $region132: #{tpu_custom_call.1} parent=79 // pred_fallthru
          _
      $region80: #{tpu_custom_call.1} parent=5 // pred_fallthru
        _
      %p2019 = scmp.le.s32.totalorder 2, %s40
      // Predicated region
      $region133: #{tpu_custom_call.1} parent=5 // pred_check
        %p2020 = pneg %p2019
      $region134: #{tpu_custom_call.1} parent=5 // pred_check_branch
        %2022 = sbr.rel (%p2020) target = $region136
      $region135: #{tpu_custom_call.1} parent=5 // pred_region
        %s2023 = ssub.s32 %s40, 2
        // Predicated region
        $region137: #{tpu_custom_call.1} parent=135 // pred_check
          %p2024 = pneg %p421
        $region138: #{tpu_custom_call.1} parent=135 // pred_check_branch
          %2026 = sbr.rel (%p2024) target = $region140
        $region139: #{tpu_custom_call.1} parent=135 // pred_region
          %s2027 = sand.u32 %s406, 1
          %s2028 = scalar_lea.sflag [#allocation5], %s2027
          %s2029 = sand.u32 %s406, 1
          %s2030 = smul.addr %s2029, 8
          %s2031 = scalar_lea.vmem [#allocation18], %s2030
          %2032 = dma.done %s2028, 128
        $region140: #{tpu_custom_call.1} parent=135 // pred_fallthru
          _
        // Predicated region
        $region141: #{tpu_custom_call.1} parent=135 // pred_check
          %p2033 = pneg %p447
        $region142: #{tpu_custom_call.1} parent=135 // pred_check_branch
          %2035 = sbr.rel (%p2033) target = $region144
        $region143: #{tpu_custom_call.1} parent=135 // pred_region
          %s2036 = sand.u32 %s432, 1
          %s2037 = scalar_lea.sflag [#allocation20], %s2036
          %s2038 = sand.u32 %s432, 1
          %s2039 = smul.addr %s2038, 8
          %s2040 = scalar_lea.vmem [#allocation19], %s2039
          %2041 = dma.done %s2037, 128
        $region144: #{tpu_custom_call.1} parent=135 // pred_fallthru
          _
      $region136: #{tpu_custom_call.1} parent=5 // pred_fallthru
        _
    $region6: #{tpu_custom_call.1} parent=1 // loop_footer
      %s44 = sadd.s32 1, %s40
    $region7: #{tpu_custom_call.1} parent=1 // loop_footer_branch
      %39 = sbr.rel target = $region3
    $region8: #{tpu_custom_call.1} parent=1 // loop_exit
      _
    %2042 = vsyncpa [#allocation4], 1
    %s2043 = scalar_lea.sflag [#allocation4], 1
    %2044 = vsyncpa %s2043, 1
    %2045 = vsyncpa [#allocation7], 1
    %s2046 = scalar_lea.sflag [#allocation7], 1
    %2047 = vsyncpa %s2046, 1
    %2048 = vsyncpa [#allocation10], 1
    %s2049 = scalar_lea.sflag [#allocation10], 1
    %2050 = vsyncpa %s2049, 1
    %2051 = vsyncpa [#allocation13], 1
    %2052 = vsyncpa [#allocation16], 1
    %2053 = vsyncpa [#allocation5], 1
    %s2054 = scalar_lea.sflag [#allocation5], 1
    %2055 = vsyncpa %s2054, 1
    %2056 = vsyncpa [#allocation20], 1
    %s2057 = scalar_lea.sflag [#allocation20], 1
    %2058 = vsyncpa %s2057, 1

</llo_original>
